<compile_context>
chip_gen: v7x
topology: tpu7x:2x2x1
jax: 0.10.0
libtpu: 0.0.40
codegen_flags: <defaults>
</compile_context>

<pallas_src>
import functools

import jax
import jax.numpy as jnp
from jax.experimental import pallas as pl
from jax.experimental.pallas import tpu as pltpu


def _round_up(x, m):
    return ((x + m - 1) // m) * m


# ----------------------------------------------------------------------------
# Fused Pallas kernel: flow-field MLP + transport messages, cell-last layout
# ----------------------------------------------------------------------------
def fused_transport_kernel(geoT_ref, ugT_ref, dataT_ref,
                           w1g_ref, w1u_ref, b1_ref, w2t_ref, b2_ref,
                           w3t_ref, b3_ref, o_ref, *, V, S, F, mxu_dtype):
    """One (cell-tile, batch) grid step.  Cell-last layout (cells on the lane axis).

      geoT_ref  : (Dgeo, TC)    batch-free geometry rows [centers; local vertex pos]
      ugT_ref   : (1, V*F, TC)  u at cell vertices, row = v*F + f   (f32, reused twice)
      dataT_ref : (V*V*S, TC)   convection data, row = (j*V + i)*S + s
      w1g/w1u   : (H, Dgeo), (H, V*F)   split & transposed first-layer weights
      b1_ref    : (1, H, 1)     per-batch bias  b1 + t @ W1_time
      w2t, b2   : (H, H), (H, 1)
      w3t, b3   : (S*F, H), (S*F, 1)   last layer rows permuted (f,s) -> (s,f)
      o_ref     : (1, V*F, TC)  messages, row = i*F + f
    """
    TC = o_ref.shape[-1]

    ug = ugT_ref[0]                                                    # (V*F, TC) f32
    geo = geoT_ref[...]                                                # (Dgeo, TC) mxu dtype
    data = dataT_ref[...]                                              # (V*V*S, TC) f32

    # ---- flow-field MLP: (split Linear) -> tanh -> Linear -> tanh -> Linear ----
    ug_m = ug.astype(mxu_dtype)
    h = jnp.dot(w1g_ref[...], geo, preferred_element_type=jnp.float32)
    h = h + jnp.dot(w1u_ref[...], ug_m, preferred_element_type=jnp.float32)
    h = jnp.tanh(h + b1_ref[0])                                        # (H, TC) f32
    h = jnp.tanh(jnp.dot(w2t_ref[...], h.astype(mxu_dtype),
                         preferred_element_type=jnp.float32) + b2_ref[...])
    flow = jnp.dot(w3t_ref[...], h.astype(mxu_dtype),
                   preferred_element_type=jnp.float32) + b3_ref[...]   # (S*F, TC) f32

    # m[(j, s)][f, c] = u(vertex j, feature f) * flow(feature f, space s)
    # hoisted out of the i loop (shared by all test functions i).
    ms = []
    for j in range(V):
        ug_j = ug[j * F:(j + 1) * F, :]                                # (F, TC)
        for s in range(S):
            ms.append(ug_j * flow[s * F:(s + 1) * F, :])               # (F, TC)

    # acc_i[f, c] = sum_{j,s} data[j, i, s, c] * m[(j,s)][f, c]
    # stored directly into lane-dense (F, TC) slabs of the output block.
    for i in range(V):
        acc = jnp.zeros((F, TC), jnp.float32)
        idx = 0
        for j in range(V):
            for s in range(S):
                r = (j * V + i) * S + s
                acc = acc + data[r:r + 1, :] * ms[idx]                 # (F, TC)
                idx += 1
        o_ref[0, i * F:(i + 1) * F, :] = acc


# ----------------------------------------------------------------------------
# Forward wrapper (whole function jitted; glue fuses around one pallas_call)
# ----------------------------------------------------------------------------
def _forward_impl(params, t, u, domain, stationary, autonomous, tc, mxu_dtype,
                  cell_last_output):
    w1, b1, w2, b2, w3, b3 = params
    triangulation = domain["triangulation"]                  # (C, V) int
    cell_centers = domain["cell_centers"]                    # (C, S)
    cell_local_vertex_pos = domain["cell_local_vertex_pos"]  # (C, V, S)
    conv_data = domain["convection_data"]                    # (V, V, C, S)

    mdt = jnp.bfloat16 if mxu_dtype == "bfloat16" else jnp.float32
    hp = jax.lax.Precision.HIGHEST

    B, _, F = u.shape
    C, V = triangulation.shape
    S = cell_centers.shape[-1]
    H = w1.shape[1]
    Dout = F * S
    VF = V * F
    VVS = V * V * S

    # ---- gather ONCE; everything in cell-last layout ----
    ug4 = u[:, triangulation, :]                                       # (B, C, V, F)
    ugT = jnp.transpose(ug4, (0, 2, 3, 1)).reshape(B, VF, C)           # row v*F+f (f32)

    # batch-free geometry rows (never broadcast over batch, never duplicated in HBM)
    geo_rows = []
    if not stationary:
        geo_rows.append(cell_centers.T)                                # (S, C)
    geo_rows.append(cell_local_vertex_pos.reshape(C, V * S).T)         # (V*S, C)
    geoT = jnp.concatenate(geo_rows, axis=0)                           # (Dgeo, C)
    Dgeo = geoT.shape[0]
    geoT = geoT.astype(mdt)

    dataT = jnp.transpose(conv_data, (0, 1, 3, 2)).reshape(VVS, C)     # f32

    # split first-layer weights to match the original feature order:
    # [time (TD), centers (S), local vertex pos (V*S), vertex features (V*F)]
    off = 0
    if not autonomous:
        TD = t.shape[-1]
        w1_time = w1[:TD]                                              # (TD, H)
        b1_eff = b1 + jnp.dot(t, w1_time, precision=hp)                # (B, H)
        off = TD
    else:
        b1_eff = jnp.broadcast_to(b1, (B, H))
    w1_geo = w1[off:off + Dgeo]                                        # (Dgeo, H)
    w1_ug = w1[off + Dgeo:]                                            # (V*F, H)

    w1g = w1_geo.T.astype(mdt)                                         # (H, Dgeo)
    w1u = w1_ug.T.astype(mdt)                                          # (H, V*F)
    w2t = w2.T.astype(mdt)                                             # (H, H)
    # last layer rows permuted from (f, s) to (s, f) order
    w3t = w3.T.reshape(F, S, H).transpose(1, 0, 2).reshape(Dout, H).astype(mdt)
    b1c = b1_eff.reshape(B, H, 1).astype(jnp.float32)
    b2c = b2.reshape(H, 1)
    b3c = b3.reshape(F, S).T.reshape(Dout, 1)

    # ---- cell tile: as large as sensible, but keep >= 2 cell tiles for 2-TC sharding
    tc_eff = max(128, min(tc, _round_up(C, 128)))
    if C > 128 and pl.cdiv(C, tc_eff) < 2:
        tc_eff = _round_up(pl.cdiv(C, 2), 128)
    Cp = _round_up(C, tc_eff)
    if Cp != C:
        pc = Cp - C
        geoT = jnp.pad(geoT, ((0, 0), (0, pc)))
        ugT = jnp.pad(ugT, ((0, 0), (0, 0), (0, pc)))
        dataT = jnp.pad(dataT, ((0, 0), (0, pc)))    # zero data => padded msgs are 0

    # vmem limit from the actual footprint (double-buffered streams + temporaries)
    geo_isz = 2 if mdt == jnp.bfloat16 else 4
    per_step = tc_eff * (Dgeo * geo_isz + VF * 4 + VVS * 4 + VF * 4)
    scratch = tc_eff * (4 * H * 4 + (V * S) * F * 4 + 2 * Dout * 4)
    vmem_limit = int(min(max(2 * per_step + scratch + (8 << 20), 16 << 20), 48 << 20))

    # grid: cell tiles OUTER (parallel -> megacore / 2-TC), batch INNERMOST so the
    # batch-free inputs keep the same block index and are not re-DMAed per batch.
    grid = (Cp // tc_eff, B)
    kernel = functools.partial(fused_transport_kernel, V=V, S=S, F=F, mxu_dtype=mdt)
    out = pl.pallas_call(
        kernel,
        out_shape=jax.ShapeDtypeStruct((B, VF, Cp), jnp.float32),
        grid_spec=pltpu.PrefetchScalarGridSpec(
            num_scalar_prefetch=0,
            grid=grid,
            in_specs=[
                pl.BlockSpec((Dgeo, tc_eff), lambda c, b: (0, c)),         # geoT
                pl.BlockSpec((1, VF, tc_eff), lambda c, b: (b, 0, c)),     # ugT
                pl.BlockSpec((VVS, tc_eff), lambda c, b: (0, c)),          # dataT
                pl.BlockSpec((H, Dgeo), lambda c, b: (0, 0)),              # w1g
                pl.BlockSpec((H, VF), lambda c, b: (0, 0)),                # w1u
                pl.BlockSpec((1, H, 1), lambda c, b: (b, 0, 0)),           # b1_eff
                pl.BlockSpec((H, H), lambda c, b: (0, 0)),                 # w2t
                pl.BlockSpec((H, 1), lambda c, b: (0, 0)),                 # b2
                pl.BlockSpec((Dout, H), lambda c, b: (0, 0)),              # w3t
                pl.BlockSpec((Dout, 1), lambda c, b: (0, 0)),              # b3
            ],
            out_specs=pl.BlockSpec((1, VF, tc_eff), lambda c, b: (b, 0, c)),
        ),
        compiler_params=pltpu.CompilerParams(
            dimension_semantics=("parallel", "arbitrary"),
            vmem_limit_bytes=vmem_limit,
        ),
    )(geoT, ugT, dataT, w1g, w1u, b1c, w2t, b2c, w3t, b3c)

    out = out[:, :, :C]                                                # drop padding
    if cell_last_output:
        return out                                                     # (B, V*F, C), row i*F+f
    return jnp.transpose(out.reshape(B, V, F, C), (0, 3, 1, 2))        # (B, C, I, F)


@functools.partial(jax.jit, static_argnames=("stationary", "autonomous", "tc",
                                              "mxu_dtype", "cell_last_output"))
def transport_term_forward(params, t, u, domain, *, stationary=False,
                           autonomous=False, tc=2048, mxu_dtype="bfloat16",
                           cell_last_output=False):
    assert tc >= 128, "cell tile must be at least 128 lanes"
    assert mxu_dtype in ("bfloat16", "float32")
    return _forward_impl(params, t, u, domain, stationary, autonomous, tc,
                         mxu_dtype, cell_last_output)


# ----------------------------------------------------------------------------
# Pure-JAX reference (mirrors the PyTorch forward exactly)
# ----------------------------------------------------------------------------
def cell_features_ref(t, u, triangulation, cell_centers, cell_local_vertex_pos,
                      stationary, autonomous):
    B = u.shape[0]
    C, V = triangulation.shape
    S = cell_centers.shape[-1]
    F = u.shape[-1]
    vert_pos = jnp.broadcast_to(cell_local_vertex_pos.reshape(C, V * S), (B, C, V * S))
    vert_feat = u[:, triangulation, :].reshape(B, C, V * F)
    feats = [vert_pos, vert_feat]
    if not stationary:
        feats.insert(0, jnp.broadcast_to(cell_centers, (B, C, S)))
    if not autonomous:
        feats.insert(0, jnp.broadcast_to(t[:, None, :], (B, C, t.shape[-1])))
    return jnp.concatenate(feats, axis=-1)


def mlp_ref(x, w1, b1, w2, b2, w3, b3):
    hp = jax.lax.Precision.HIGHEST
    h = jnp.tanh(jnp.dot(x, w1, precision=hp) + b1)
    h = jnp.tanh(jnp.dot(h, w2, precision=hp) + b2)
    return jnp.dot(h, w3, precision=hp) + b3


def transport_term_ref(params, t, u, domain, *, stationary=False, autonomous=False):
    triangulation = domain["triangulation"]
    conv_data = domain["convection_data"]
    B, _, F = u.shape
    C, V = triangulation.shape
    S = domain["cell_centers"].shape[-1]
    x = cell_features_ref(t, u, triangulation, domain["cell_centers"],
                          domain["cell_local_vertex_pos"], stationary, autonomous)
    flow_field = mlp_ref(x, *params).reshape(B, C, F, S)
    # convection_cols[j, i, c] = triangulation[c, j]  (independent of i)
    cols = jnp.broadcast_to(triangulation.T[:, None, :], (V, V, C))
    u_cols = u[:, cols, :]                                             # (B, J, I, C, F)
    return jnp.einsum("jics,bjicf,bcfs->bcif", conv_data, u_cols, flow_field,
                      precision=jax.lax.Precision.HIGHEST)


# ----------------------------------------------------------------------------
# Deterministic parameter / domain construction
# ----------------------------------------------------------------------------
def init_linear(key, fan_in, fan_out):
    kw, kb = jax.random.split(key)
    bound = 1.0 / jnp.sqrt(fan_in)
    w = jax.random.uniform(kw, (fan_in, fan_out), jnp.float32, -bound, bound)
    b = jax.random.uniform(kb, (1, fan_out), jnp.float32, -bound, bound)
    return w, b


if __name__ == "__main__":
    # batch=2, nodes=64, cells=512, space_dim=2, vertices=3, features=4, hidden=32
    B, N, C, S, V, F, H, TD = 2, 64, 512, 2, 3, 4, 32, 1
    stationary, autonomous, zero_init = False, False, False

    key = jax.random.PRNGKey(0)
    k = iter(jax.random.split(key, 16))

    # synthetic FENDomainInfo (skfem assembly is host-side precompute; synthetic here)
    triangulation = jax.random.randint(next(k), (C, V), 0, N)
    node_pos = jax.random.normal(next(k), (N, S), jnp.float32)
    vertex_pos = node_pos[triangulation]                               # (C, V, S)
    cell_centers = vertex_pos.mean(axis=1)                             # (C, S)
    cell_local_vertex_pos = vertex_pos - cell_centers[:, None, :]      # (C, V, S)
    convection_data = 0.1 * jax.random.normal(next(k), (V, V, C, S), jnp.float32)
    domain = dict(triangulation=triangulation, cell_centers=cell_centers,
                  cell_local_vertex_pos=cell_local_vertex_pos,
                  convection_data=convection_data)

    # system state
    t = jax.random.normal(next(k), (B, TD), jnp.float32)
    u = jax.random.normal(next(k), (B, N, F), jnp.float32)

    # flow_field_mlp: in_dim = V*(S+F) + S + TD, out_dim = F*S, 2 hidden layers, tanh
    Din = V * (S + F) + (0 if stationary else S) + (0 if autonomous else TD)
    Dout = F * S
    w1, b1 = init_linear(next(k), Din, H)
    w2, b2 = init_linear(next(k), H, H)
    w3, b3 = init_linear(next(k), H, Dout)
    if zero_init:
        w3, b3 = jnp.zeros_like(w3), jnp.zeros_like(b3)
    params = (w1, b1, w2, b2, w3, b3)

    ref = jax.block_until_ready(
        transport_term_ref(params, t, u, domain,
                           stationary=stationary, autonomous=autonomous))

    # exact-precision path (f32 MXU): tight check against the PyTorch-equivalent ref
    out32 = transport_term_forward(params, t, u, domain,
                                   stationary=stationary, autonomous=autonomous,
                                   tc=2048, mxu_dtype="float32")
    out32 = jax.block_until_ready(out32)
    assert out32.shape == (B, C, V, F)
    err32 = float(jnp.max(jnp.abs(out32 - ref)))
    assert jnp.allclose(out32, ref, rtol=1e-3, atol=1e-4), err32

    # fast path (bf16 MXU operands, f32 accumulate): loose sanity check
    out16 = transport_term_forward(params, t, u, domain,
                                   stationary=stationary, autonomous=autonomous,
                                   tc=2048, mxu_dtype="bfloat16")
    out16 = jax.block_until_ready(out16)
    assert out16.shape == (B, C, V, F)
    err16 = float(jnp.max(jnp.abs(out16 - ref)))
    assert jnp.allclose(out16, ref, rtol=5e-2, atol=5e-2), err16

    print("KERNEL_OK")
</pallas_src>

<mosaic_0001>
module attributes {stable_mosaic.version = 11 : i64} {
  func.func @fused_transport_kernel(%arg0: i32, %arg1: i32, %arg2: memref<8x256xf32, #tpu.memory_space<vmem>>, %arg3: memref<1x12x256xf32, #tpu.memory_space<vmem>>, %arg4: memref<18x256xf32, #tpu.memory_space<vmem>>, %arg5: memref<32x8xf32, #tpu.memory_space<vmem>>, %arg6: memref<32x12xf32, #tpu.memory_space<vmem>>, %arg7: memref<1x32x1xf32, #tpu.memory_space<vmem>>, %arg8: memref<32x32xf32, #tpu.memory_space<vmem>>, %arg9: memref<32x1xf32, #tpu.memory_space<vmem>>, %arg10: memref<8x32xf32, #tpu.memory_space<vmem>>, %arg11: memref<8x1xf32, #tpu.memory_space<vmem>>, %arg12: memref<1x12x256xf32, #tpu.memory_space<vmem>>) attributes {dimension_semantics = [#tpu.dimension_semantics<parallel>, #tpu.dimension_semantics<arbitrary>], iteration_bounds = array<i64: 2, 2>, scalar_prefetch = 0 : i64, scratch_operands = 0 : i64, tpu.core_type = #tpu.core_type<tc>, window_params = [{transform_indices = @transform_0, window_bounds = array<i64: 8, 256>}, {transform_indices = @transform_1, window_bounds = array<i64: 1, 12, 256>}, {transform_indices = @transform_2, window_bounds = array<i64: 18, 256>}, {pipeline_mode = #tpu.pipeline_mode<synchronous>, transform_indices = @transform_3, window_bounds = array<i64: 32, 8>}, {pipeline_mode = #tpu.pipeline_mode<synchronous>, transform_indices = @transform_4, window_bounds = array<i64: 32, 12>}, {transform_indices = @transform_5, window_bounds = array<i64: 1, 32, 1>}, {pipeline_mode = #tpu.pipeline_mode<synchronous>, transform_indices = @transform_6, window_bounds = array<i64: 32, 32>}, {pipeline_mode = #tpu.pipeline_mode<synchronous>, transform_indices = @transform_7, window_bounds = array<i64: 32, 1>}, {pipeline_mode = #tpu.pipeline_mode<synchronous>, transform_indices = @transform_8, window_bounds = array<i64: 8, 32>}, {pipeline_mode = #tpu.pipeline_mode<synchronous>, transform_indices = @transform_9, window_bounds = array<i64: 8, 1>}, {transform_indices = @transform_10, window_bounds = array<i64: 1, 12, 256>}]} {
    %c0 = arith.constant 0 : index
    %c0_0 = arith.constant 0 : index
    %c0_1 = arith.constant 0 : index
    %0 = vector.load %arg3[%c0, %c0_0, %c0_1] : memref<1x12x256xf32, #tpu.memory_space<vmem>>, vector<1x12x256xf32>
    %1 = vector.shape_cast %0 : vector<1x12x256xf32> to vector<12x256xf32>
    %c0_2 = arith.constant 0 : index
    %c0_3 = arith.constant 0 : index
    %2 = vector.load %arg2[%c0_2, %c0_3] : memref<8x256xf32, #tpu.memory_space<vmem>>, vector<8x256xf32>
    %c0_4 = arith.constant 0 : index
    %c0_5 = arith.constant 0 : index
    %3 = vector.load %arg4[%c0_4, %c0_5] : memref<18x256xf32, #tpu.memory_space<vmem>>, vector<18x256xf32>
    %c0_6 = arith.constant 0 : index
    %c0_7 = arith.constant 0 : index
    %4 = vector.load %arg5[%c0_6, %c0_7] : memref<32x8xf32, #tpu.memory_space<vmem>>, vector<32x8xf32>
    %cst = arith.constant dense<0.000000e+00> : vector<32x256xf32>
    %5 = tpu.matmul %4, %2, %cst {dimension_numbers = #tpu.dot_dimension_numbers<[1], [0], [0], [1], [0, 0, 1, 1], [], []>} : vector<32x8xf32>, vector<8x256xf32>, vector<32x256xf32> -> vector<32x256xf32>
    %c0_8 = arith.constant 0 : index
    %c0_9 = arith.constant 0 : index
    %6 = vector.load %arg6[%c0_8, %c0_9] : memref<32x12xf32, #tpu.memory_space<vmem>>, vector<32x12xf32>
    %cst_10 = arith.constant dense<0.000000e+00> : vector<32x256xf32>
    %7 = tpu.matmul %6, %1, %cst_10 {dimension_numbers = #tpu.dot_dimension_numbers<[1], [0], [0], [1], [0, 0, 1, 1], [], []>} : vector<32x12xf32>, vector<12x256xf32>, vector<32x256xf32> -> vector<32x256xf32>
    %8 = arith.addf %5, %7 : vector<32x256xf32>
    %c0_11 = arith.constant 0 : index
    %c0_12 = arith.constant 0 : index
    %c0_13 = arith.constant 0 : index
    %9 = vector.load %arg7[%c0_11, %c0_12, %c0_13] : memref<1x32x1xf32, #tpu.memory_space<vmem>>, vector<1x32x1xf32>
    %10 = vector.shape_cast %9 : vector<1x32x1xf32> to vector<32x1xf32>
    %11 = vector.broadcast %10 : vector<32x1xf32> to vector<32x256xf32>
    %12 = arith.addf %8, %11 : vector<32x256xf32>
    %13 = math.tanh %12 : vector<32x256xf32>
    %c0_14 = arith.constant 0 : index
    %c0_15 = arith.constant 0 : index
    %14 = vector.load %arg8[%c0_14, %c0_15] : memref<32x32xf32, #tpu.memory_space<vmem>>, vector<32x32xf32>
    %cst_16 = arith.constant dense<0.000000e+00> : vector<32x256xf32>
    %15 = tpu.matmul %14, %13, %cst_16 {dimension_numbers = #tpu.dot_dimension_numbers<[1], [0], [0], [1], [0, 0, 1, 1], [], []>} : vector<32x32xf32>, vector<32x256xf32>, vector<32x256xf32> -> vector<32x256xf32>
    %c0_17 = arith.constant 0 : index
    %c0_18 = arith.constant 0 : index
    %16 = vector.load %arg9[%c0_17, %c0_18] : memref<32x1xf32, #tpu.memory_space<vmem>>, vector<32x1xf32>
    %17 = vector.broadcast %16 : vector<32x1xf32> to vector<32x256xf32>
    %18 = arith.addf %15, %17 : vector<32x256xf32>
    %19 = math.tanh %18 : vector<32x256xf32>
    %c0_19 = arith.constant 0 : index
    %c0_20 = arith.constant 0 : index
    %20 = vector.load %arg10[%c0_19, %c0_20] : memref<8x32xf32, #tpu.memory_space<vmem>>, vector<8x32xf32>
    %cst_21 = arith.constant dense<0.000000e+00> : vector<8x256xf32>
    %21 = tpu.matmul %20, %19, %cst_21 {dimension_numbers = #tpu.dot_dimension_numbers<[1], [0], [0], [1], [0, 0, 1, 1], [], []>} : vector<8x32xf32>, vector<32x256xf32>, vector<8x256xf32> -> vector<8x256xf32>
    %c0_22 = arith.constant 0 : index
    %c0_23 = arith.constant 0 : index
    %22 = vector.load %arg11[%c0_22, %c0_23] : memref<8x1xf32, #tpu.memory_space<vmem>>, vector<8x1xf32>
    %23 = vector.broadcast %22 : vector<8x1xf32> to vector<8x256xf32>
    %24 = arith.addf %21, %23 : vector<8x256xf32>
    %25 = vector.extract_strided_slice %1 {offsets = [0, 0], sizes = [4, 256], strides = [1, 1]} : vector<12x256xf32> to vector<4x256xf32>
    %26 = vector.extract_strided_slice %24 {offsets = [0, 0], sizes = [4, 256], strides = [1, 1]} : vector<8x256xf32> to vector<4x256xf32>
    %27 = arith.mulf %25, %26 : vector<4x256xf32>
    %28 = vector.extract_strided_slice %24 {offsets = [4, 0], sizes = [4, 256], strides = [1, 1]} : vector<8x256xf32> to vector<4x256xf32>
    %29 = arith.mulf %25, %28 : vector<4x256xf32>
    %30 = vector.extract_strided_slice %1 {offsets = [4, 0], sizes = [4, 256], strides = [1, 1]} : vector<12x256xf32> to vector<4x256xf32>
    %31 = vector.extract_strided_slice %24 {offsets = [0, 0], sizes = [4, 256], strides = [1, 1]} : vector<8x256xf32> to vector<4x256xf32>
    %32 = arith.mulf %30, %31 : vector<4x256xf32>
    %33 = vector.extract_strided_slice %24 {offsets = [4, 0], sizes = [4, 256], strides = [1, 1]} : vector<8x256xf32> to vector<4x256xf32>
    %34 = arith.mulf %30, %33 : vector<4x256xf32>
    %35 = vector.extract_strided_slice %1 {offsets = [8, 0], sizes = [4, 256], strides = [1, 1]} : vector<12x256xf32> to vector<4x256xf32>
    %36 = vector.extract_strided_slice %24 {offsets = [0, 0], sizes = [4, 256], strides = [1, 1]} : vector<8x256xf32> to vector<4x256xf32>
    %37 = arith.mulf %35, %36 : vector<4x256xf32>
    %38 = vector.extract_strided_slice %24 {offsets = [4, 0], sizes = [4, 256], strides = [1, 1]} : vector<8x256xf32> to vector<4x256xf32>
    %39 = arith.mulf %35, %38 : vector<4x256xf32>
    %cst_24 = arith.constant 0.000000e+00 : f32
    %40 = vector.broadcast %cst_24 : f32 to vector<4x256xf32>
    %41 = vector.extract_strided_slice %3 {offsets = [0, 0], sizes = [1, 256], strides = [1, 1]} : vector<18x256xf32> to vector<1x256xf32>
    %42 = vector.broadcast %41 : vector<1x256xf32> to vector<4x256xf32>
    %43 = arith.mulf %42, %27 : vector<4x256xf32>
    %44 = arith.addf %40, %43 : vector<4x256xf32>
    %45 = vector.extract_strided_slice %3 {offsets = [1, 0], sizes = [1, 256], strides = [1, 1]} : vector<18x256xf32> to vector<1x256xf32>
    %46 = vector.broadcast %45 : vector<1x256xf32> to vector<4x256xf32>
    %47 = arith.mulf %46, %29 : vector<4x256xf32>
    %48 = arith.addf %44, %47 : vector<4x256xf32>
    %49 = vector.extract_strided_slice %3 {offsets = [6, 0], sizes = [1, 256], strides = [1, 1]} : vector<18x256xf32> to vector<1x256xf32>
    %50 = vector.broadcast %49 : vector<1x256xf32> to vector<4x256xf32>
    %51 = arith.mulf %50, %32 : vector<4x256xf32>
    %52 = arith.addf %48, %51 : vector<4x256xf32>
    %53 = vector.extract_strided_slice %3 {offsets = [7, 0], sizes = [1, 256], strides = [1, 1]} : vector<18x256xf32> to vector<1x256xf32>
    %54 = vector.broadcast %53 : vector<1x256xf32> to vector<4x256xf32>
    %55 = arith.mulf %54, %34 : vector<4x256xf32>
    %56 = arith.addf %52, %55 : vector<4x256xf32>
    %57 = vector.extract_strided_slice %3 {offsets = [12, 0], sizes = [1, 256], strides = [1, 1]} : vector<18x256xf32> to vector<1x256xf32>
    %58 = vector.broadcast %57 : vector<1x256xf32> to vector<4x256xf32>
    %59 = arith.mulf %58, %37 : vector<4x256xf32>
    %60 = arith.addf %56, %59 : vector<4x256xf32>
    %61 = vector.extract_strided_slice %3 {offsets = [13, 0], sizes = [1, 256], strides = [1, 1]} : vector<18x256xf32> to vector<1x256xf32>
    %62 = vector.broadcast %61 : vector<1x256xf32> to vector<4x256xf32>
    %63 = arith.mulf %62, %39 : vector<4x256xf32>
    %64 = arith.addf %60, %63 : vector<4x256xf32>
    %c0_25 = arith.constant 0 : index
    %c0_26 = arith.constant 0 : index
    %c0_27 = arith.constant 0 : index
    %65 = vector.load %arg12[%c0_25, %c0_26, %c0_27] : memref<1x12x256xf32, #tpu.memory_space<vmem>>, vector<1x4x256xf32>
    %66 = vector.shape_cast %65 : vector<1x4x256xf32> to vector<4x256xf32>
    %67 = vector.shape_cast %64 : vector<4x256xf32> to vector<1x4x256xf32>
    tpu.vector_store %arg12[%c0_25, %c0_26, %c0_27], %67 {strides = array<i32>} : memref<1x12x256xf32, #tpu.memory_space<vmem>>, vector<1x4x256xf32>,
    %cst_28 = arith.constant 0.000000e+00 : f32
    %68 = vector.broadcast %cst_28 : f32 to vector<4x256xf32>
    %69 = vector.extract_strided_slice %3 {offsets = [2, 0], sizes = [1, 256], strides = [1, 1]} : vector<18x256xf32> to vector<1x256xf32>
    %70 = vector.broadcast %69 : vector<1x256xf32> to vector<4x256xf32>
    %71 = arith.mulf %70, %27 : vector<4x256xf32>
    %72 = arith.addf %68, %71 : vector<4x256xf32>
    %73 = vector.extract_strided_slice %3 {offsets = [3, 0], sizes = [1, 256], strides = [1, 1]} : vector<18x256xf32> to vector<1x256xf32>
    %74 = vector.broadcast %73 : vector<1x256xf32> to vector<4x256xf32>
    %75 = arith.mulf %74, %29 : vector<4x256xf32>
    %76 = arith.addf %72, %75 : vector<4x256xf32>
    %77 = vector.extract_strided_slice %3 {offsets = [8, 0], sizes = [1, 256], strides = [1, 1]} : vector<18x256xf32> to vector<1x256xf32>
    %78 = vector.broadcast %77 : vector<1x256xf32> to vector<4x256xf32>
    %79 = arith.mulf %78, %32 : vector<4x256xf32>
    %80 = arith.addf %76, %79 : vector<4x256xf32>
    %81 = vector.extract_strided_slice %3 {offsets = [9, 0], sizes = [1, 256], strides = [1, 1]} : vector<18x256xf32> to vector<1x256xf32>
    %82 = vector.broadcast %81 : vector<1x256xf32> to vector<4x256xf32>
    %83 = arith.mulf %82, %34 : vector<4x256xf32>
    %84 = arith.addf %80, %83 : vector<4x256xf32>
    %85 = vector.extract_strided_slice %3 {offsets = [14, 0], sizes = [1, 256], strides = [1, 1]} : vector<18x256xf32> to vector<1x256xf32>
    %86 = vector.broadcast %85 : vector<1x256xf32> to vector<4x256xf32>
    %87 = arith.mulf %86, %37 : vector<4x256xf32>
    %88 = arith.addf %84, %87 : vector<4x256xf32>
    %89 = vector.extract_strided_slice %3 {offsets = [15, 0], sizes = [1, 256], strides = [1, 1]} : vector<18x256xf32> to vector<1x256xf32>
    %90 = vector.broadcast %89 : vector<1x256xf32> to vector<4x256xf32>
    %91 = arith.mulf %90, %39 : vector<4x256xf32>
    %92 = arith.addf %88, %91 : vector<4x256xf32>
    %c0_29 = arith.constant 0 : index
    %c4 = arith.constant 4 : index
    %c0_30 = arith.constant 0 : index
    %93 = vector.load %arg12[%c0_29, %c4, %c0_30] : memref<1x12x256xf32, #tpu.memory_space<vmem>>, vector<1x4x256xf32>
    %94 = vector.shape_cast %93 : vector<1x4x256xf32> to vector<4x256xf32>
    %95 = vector.shape_cast %92 : vector<4x256xf32> to vector<1x4x256xf32>
    tpu.vector_store %arg12[%c0_29, %c4, %c0_30], %95 {strides = array<i32>} : memref<1x12x256xf32, #tpu.memory_space<vmem>>, vector<1x4x256xf32>,
    %cst_31 = arith.constant 0.000000e+00 : f32
    %96 = vector.broadcast %cst_31 : f32 to vector<4x256xf32>
    %97 = vector.extract_strided_slice %3 {offsets = [4, 0], sizes = [1, 256], strides = [1, 1]} : vector<18x256xf32> to vector<1x256xf32>
    %98 = vector.broadcast %97 : vector<1x256xf32> to vector<4x256xf32>
    %99 = arith.mulf %98, %27 : vector<4x256xf32>
    %100 = arith.addf %96, %99 : vector<4x256xf32>
    %101 = vector.extract_strided_slice %3 {offsets = [5, 0], sizes = [1, 256], strides = [1, 1]} : vector<18x256xf32> to vector<1x256xf32>
    %102 = vector.broadcast %101 : vector<1x256xf32> to vector<4x256xf32>
    %103 = arith.mulf %102, %29 : vector<4x256xf32>
    %104 = arith.addf %100, %103 : vector<4x256xf32>
    %105 = vector.extract_strided_slice %3 {offsets = [10, 0], sizes = [1, 256], strides = [1, 1]} : vector<18x256xf32> to vector<1x256xf32>
    %106 = vector.broadcast %105 : vector<1x256xf32> to vector<4x256xf32>
    %107 = arith.mulf %106, %32 : vector<4x256xf32>
    %108 = arith.addf %104, %107 : vector<4x256xf32>
    %109 = vector.extract_strided_slice %3 {offsets = [11, 0], sizes = [1, 256], strides = [1, 1]} : vector<18x256xf32> to vector<1x256xf32>
    %110 = vector.broadcast %109 : vector<1x256xf32> to vector<4x256xf32>
    %111 = arith.mulf %110, %34 : vector<4x256xf32>
    %112 = arith.addf %108, %111 : vector<4x256xf32>
    %113 = vector.extract_strided_slice %3 {offsets = [16, 0], sizes = [1, 256], strides = [1, 1]} : vector<18x256xf32> to vector<1x256xf32>
    %114 = vector.broadcast %113 : vector<1x256xf32> to vector<4x256xf32>
    %115 = arith.mulf %114, %37 : vector<4x256xf32>
    %116 = arith.addf %112, %115 : vector<4x256xf32>
    %117 = vector.extract_strided_slice %3 {offsets = [17, 0], sizes = [1, 256], strides = [1, 1]} : vector<18x256xf32> to vector<1x256xf32>
    %118 = vector.broadcast %117 : vector<1x256xf32> to vector<4x256xf32>
    %119 = arith.mulf %118, %39 : vector<4x256xf32>
    %120 = arith.addf %116, %119 : vector<4x256xf32>
    %c0_32 = arith.constant 0 : index
    %c8 = arith.constant 8 : index
    %c0_33 = arith.constant 0 : index
    %121 = vector.load %arg12[%c0_32, %c8, %c0_33] : memref<1x12x256xf32, #tpu.memory_space<vmem>>, vector<1x4x256xf32>
    %122 = vector.shape_cast %121 : vector<1x4x256xf32> to vector<4x256xf32>
    %123 = vector.shape_cast %120 : vector<4x256xf32> to vector<1x4x256xf32>
    tpu.vector_store %arg12[%c0_32, %c8, %c0_33], %123 {strides = array<i32>} : memref<1x12x256xf32, #tpu.memory_space<vmem>>, vector<1x4x256xf32>,
    return
  }
  func.func @transform_0(%arg0: i32, %arg1: i32) -> (i32, i32) {
    %c0_i32 = arith.constant 0 : i32
    %c0_i32_0 = arith.constant 0 : i32
    return %c0_i32, %arg0 : i32, i32
  }
  func.func @transform_1(%arg0: i32, %arg1: i32) -> (i32, i32, i32) {
    %c0_i32 = arith.constant 0 : i32
    %c0_i32_0 = arith.constant 0 : i32
    return %arg1, %c0_i32, %arg0 : i32, i32, i32
  }
  func.func @transform_2(%arg0: i32, %arg1: i32) -> (i32, i32) {
    %c0_i32 = arith.constant 0 : i32
    %c0_i32_0 = arith.constant 0 : i32
    return %c0_i32, %arg0 : i32, i32
  }
  func.func @transform_3(%arg0: i32, %arg1: i32) -> (i32, i32) {
    %c0_i32 = arith.constant 0 : i32
    %c0_i32_0 = arith.constant 0 : i32
    %c0_i32_1 = arith.constant 0 : i32
    return %c0_i32, %c0_i32_0 : i32, i32
  }
  func.func @transform_4(%arg0: i32, %arg1: i32) -> (i32, i32) {
    %c0_i32 = arith.constant 0 : i32
    %c0_i32_0 = arith.constant 0 : i32
    %c0_i32_1 = arith.constant 0 : i32
    return %c0_i32, %c0_i32_0 : i32, i32
  }
  func.func @transform_5(%arg0: i32, %arg1: i32) -> (i32, i32, i32) {
    %c0_i32 = arith.constant 0 : i32
    %c0_i32_0 = arith.constant 0 : i32
    %c0_i32_1 = arith.constant 0 : i32
    return %arg1, %c0_i32, %c0_i32_0 : i32, i32, i32
  }
  func.func @transform_6(%arg0: i32, %arg1: i32) -> (i32, i32) {
    %c0_i32 = arith.constant 0 : i32
    %c0_i32_0 = arith.constant 0 : i32
    %c0_i32_1 = arith.constant 0 : i32
    return %c0_i32, %c0_i32_0 : i32, i32
  }
  func.func @transform_7(%arg0: i32, %arg1: i32) -> (i32, i32) {
    %c0_i32 = arith.constant 0 : i32
    %c0_i32_0 = arith.constant 0 : i32
    %c0_i32_1 = arith.constant 0 : i32
    return %c0_i32, %c0_i32_0 : i32, i32
  }
  func.func @transform_8(%arg0: i32, %arg1: i32) -> (i32, i32) {
    %c0_i32 = arith.constant 0 : i32
    %c0_i32_0 = arith.constant 0 : i32
    %c0_i32_1 = arith.constant 0 : i32
    return %c0_i32, %c0_i32_0 : i32, i32
  }
  func.func @transform_9(%arg0: i32, %arg1: i32) -> (i32, i32) {
    %c0_i32 = arith.constant 0 : i32
    %c0_i32_0 = arith.constant 0 : i32
    %c0_i32_1 = arith.constant 0 : i32
    return %c0_i32, %c0_i32_0 : i32, i32
  }
  func.func @transform_10(%arg0: i32, %arg1: i32) -> (i32, i32, i32) {
    %c0_i32 = arith.constant 0 : i32
    %c0_i32_0 = arith.constant 0 : i32
    return %arg1, %c0_i32, %arg0 : i32, i32, i32
  }
}

</mosaic_0001>

<llo_original>
// kernel: transport_term_forward.1
$region0: #{transport_term_forward.1}
  #allocation0 [shape = 'u32[]', space=smem, size = 0x4, offset = 0x4, fixed_abs, tag = 'smem constant byte address 0x4 - core index']
  #allocation1 [shape = 'u32[144,128]{1,0:T(1,128)}', space=vmem, size = 0x12000, scoped, tag = 'internal scratch']
  %s0 = inlined_call_operand.vmem [shape: f32[8,512], index: 0, kind: input, shape index: {}]
  %s1 = inlined_call_operand.vmem [shape: f32[2,12,512], index: 1, kind: input, shape index: {}]
  %s2 = inlined_call_operand.vmem [shape: f32[18,512], index: 2, kind: input, shape index: {}]
  %s3 = inlined_call_operand.vmem [shape: f32[32,8], index: 3, kind: input, shape index: {}]
  %s4 = inlined_call_operand.vmem [shape: f32[32,12], index: 4, kind: input, shape index: {}]
  %s5 = inlined_call_operand.vmem [shape: f32[2,32,1], index: 5, kind: input, shape index: {}]
  %s6 = inlined_call_operand.vmem [shape: f32[32,32], index: 6, kind: input, shape index: {}]
  %s7 = inlined_call_operand.vmem [shape: f32[32,1], index: 7, kind: input, shape index: {}]
  %s8 = inlined_call_operand.vmem [shape: f32[8,32], index: 8, kind: input, shape index: {}]
  %s9 = inlined_call_operand.vmem [shape: f32[8,1], index: 9, kind: input, shape index: {}]
  %s10 = inlined_call_operand.vmem [shape: f32[2,12,512], index: 10, kind: output, shape index: {}]
  %s11 = sld [smem:[#allocation0]]
  $region138: #{transport_term_forward.1} parent=0
    _
  %s13 = ssub.s32 1, %s11
  %s14 = scalar_select 0, %s13, %s11
  $region1: #{transport_term_forward.1} parent=0
    #allocation2 [shape = 'u8[32768]{0}', space=vmem, size = 0x8000, scoped, tag = 'input window, operand 1']
    #allocation3 [shape = 'u8[49152]{0}', space=vmem, size = 0xc000, scoped, tag = 'input window, operand 2']
    #allocation4 [shape = 'u8[32768]{0}', space=vmem, size = 0x8000, scoped, tag = 'output window, operand 0']
    loop: start=0, step=1, limit=6
    $region2: #{transport_term_forward.1} parent=1 // loop_pre_header
      _
    $region3: #{transport_term_forward.1} parent=1 // loop_header
      %s16 = sphi 0, %s20
      %p17 = scmp.ge.s32.totalorder %s16, 6
      %s23 = sphi 0, %s35
      %s24 = sphi 0, %s31
      %s25 = sphi 0, %s23
      %s26 = sphi 0, %s24
      %s27 = sphi 0, %s25
      %s28 = sphi 0, %s26
      %s38 = sphi 0, %s40
      %s41 = sphi 0, %s38
      %s42 = sphi 0, %s41
      %s58 = sphi 0, %s42
      %s66 = sphi 0, %s68
      %s69 = sphi 0, %s66
      %s70 = sphi 0, %s69
      %s86 = sphi 0, %s70
      %s92 = sphi 0, %s94
      %s95 = sphi 0, %s92
      %s96 = sphi 0, %s95
      %s112 = sphi 0, %s96
      %s116 = sphi 0, %s116
      %s118 = sphi 0, %s116
      %s119 = sphi 0, %s118
      %s133 = sphi 0, %s119
      %s137 = sphi 0, %s137
      %s139 = sphi 0, %s137
      %s140 = sphi 0, %s139
      %s154 = sphi 0, %s140
      %s160 = sphi 0, %s162
      %s163 = sphi 0, %s160
      %s164 = sphi 0, %s163
      %s180 = sphi 0, %s164
      %s184 = sphi 0, %s184
      %s186 = sphi 0, %s184
      %s187 = sphi 0, %s186
      %s201 = sphi 0, %s187
      %s205 = sphi 0, %s205
      %s207 = sphi 0, %s205
      %s208 = sphi 0, %s207
      %s222 = sphi 0, %s208
      %s226 = sphi 0, %s226
      %s228 = sphi 0, %s226
      %s229 = sphi 0, %s228
      %s243 = sphi 0, %s229
      %s247 = sphi 0, %s247
      %s249 = sphi 0, %s247
      %s250 = sphi 0, %s249
      %s264 = sphi 0, %s250
      %s272 = sphi 0, %s274
      %s275 = sphi 0, %s272
      %s276 = sphi 0, %s275
      %s292 = sphi 0, %s276
    $region4: #{transport_term_forward.1} parent=1 // loop_header_branch
      %19 = sbr.rel (%p17) target = $region8
    $region5: #{transport_term_forward.1} parent=1 // loop_body
      %s21 = ssub.s32 %s16, 1
      %s22 = ssub.s32 %s16, 2
      %s29 = sadd.s32 1, %s24
      %p30 = scmp.ge.s32.totalorder %s29, 2
      %s31 = scalar_select %p30, 0, %s29
      %s32 = sadd.s32 1, %s23
      %s33 = scalar_select %p30, %s32, %s23
      %p34 = scmp.ge.s32.totalorder %s33, 2
      %s35 = scalar_select %p34, 0, %s33
      %s36 = ssub.s32 %s23, %s35
      %p37 = scmp.eq.s32.totalorder %s36, 0
      %s39 = sadd.s32 %s38, 1
      %s40 = scalar_select %p37, %s38, %s39
      %p43 = pneg %p37
      %p44 = scmp.eq.s32.totalorder %s16, 3
      %p45 = por %p43, %p44
      %p46 = scmp.ne.s32.totalorder %s38, %s41
      %p47 = scmp.eq.s32.totalorder %s16, 0
      %p48 = por %p46, %p47
      %p49 = scmp.ne.s32.totalorder %s38, %s41
      %p50 = scmp.eq.s32.totalorder %s21, 3
      %p51 = por %p49, %p50
      %p52 = scmp.ne.s32.totalorder %s41, %s42
      %p53 = scmp.eq.s32.totalorder %s21, 0
      %p54 = por %p52, %p53
      %p55 = scmp.ne.s32.totalorder %s41, %s42
      %p56 = scmp.eq.s32.totalorder %s22, 3
      %p57 = por %p55, %p56
      %p59 = scmp.ne.s32.totalorder %s42, %s58
      %p60 = scmp.eq.s32.totalorder %s22, 0
      %p61 = por %p59, %p60
      %s62 = ssub.s32 %s24, %s31
      %s63 = ssub.s32 %s23, %s35
      %s64 = sor.u32 %s62, %s63
      %p65 = scmp.eq.s32.totalorder %s64, 0
      %s67 = sadd.s32 %s66, 1
      %s68 = scalar_select %p65, %s66, %s67
      %p71 = pneg %p65
      %p72 = scmp.eq.s32.totalorder %s16, 3
      %p73 = por %p71, %p72
      %p74 = scmp.ne.s32.totalorder %s66, %s69
      %p75 = scmp.eq.s32.totalorder %s16, 0
      %p76 = por %p74, %p75
      %p77 = scmp.ne.s32.totalorder %s66, %s69
      %p78 = scmp.eq.s32.totalorder %s21, 3
      %p79 = por %p77, %p78
      %p80 = scmp.ne.s32.totalorder %s69, %s70
      %p81 = scmp.eq.s32.totalorder %s21, 0
      %p82 = por %p80, %p81
      %p83 = scmp.ne.s32.totalorder %s69, %s70
      %p84 = scmp.eq.s32.totalorder %s22, 3
      %p85 = por %p83, %p84
      %p87 = scmp.ne.s32.totalorder %s70, %s86
      %p88 = scmp.eq.s32.totalorder %s22, 0
      %p89 = por %p87, %p88
      %s90 = ssub.s32 %s23, %s35
      %p91 = scmp.eq.s32.totalorder %s90, 0
      %s93 = sadd.s32 %s92, 1
      %s94 = scalar_select %p91, %s92, %s93
      %p97 = pneg %p91
      %p98 = scmp.eq.s32.totalorder %s16, 3
      %p99 = por %p97, %p98
      %p100 = scmp.ne.s32.totalorder %s92, %s95
      %p101 = scmp.eq.s32.totalorder %s16, 0
      %p102 = por %p100, %p101
      %p103 = scmp.ne.s32.totalorder %s92, %s95
      %p104 = scmp.eq.s32.totalorder %s21, 3
      %p105 = por %p103, %p104
      %p106 = scmp.ne.s32.totalorder %s95, %s96
      %p107 = scmp.eq.s32.totalorder %s21, 0
      %p108 = por %p106, %p107
      %p109 = scmp.ne.s32.totalorder %s95, %s96
      %p110 = scmp.eq.s32.totalorder %s22, 3
      %p111 = por %p109, %p110
      %p113 = scmp.ne.s32.totalorder %s96, %s112
      %p114 = scmp.eq.s32.totalorder %s22, 0
      %p115 = por %p113, %p114
      %s117 = sadd.s32 %s116, 1
      %p120 = scmp.eq.s32.totalorder %s16, 3
      %p121 = scmp.ne.s32.totalorder %s116, %s118
      %p122 = scmp.eq.s32.totalorder %s16, 0
      %p123 = por %p121, %p122
      %p124 = scmp.ne.s32.totalorder %s116, %s118
      %p125 = scmp.eq.s32.totalorder %s21, 3
      %p126 = por %p124, %p125
      %p127 = scmp.ne.s32.totalorder %s118, %s119
      %p128 = scmp.eq.s32.totalorder %s21, 0
      %p129 = por %p127, %p128
      %p130 = scmp.ne.s32.totalorder %s118, %s119
      %p131 = scmp.eq.s32.totalorder %s22, 3
      %p132 = por %p130, %p131
      %p134 = scmp.ne.s32.totalorder %s119, %s133
      %p135 = scmp.eq.s32.totalorder %s22, 0
      %p136 = por %p134, %p135
      %s138 = sadd.s32 %s137, 1
      %p141 = scmp.eq.s32.totalorder %s16, 3
      %p142 = scmp.ne.s32.totalorder %s137, %s139
      %p143 = scmp.eq.s32.totalorder %s16, 0
      %p144 = por %p142, %p143
      %p145 = scmp.ne.s32.totalorder %s137, %s139
      %p146 = scmp.eq.s32.totalorder %s21, 3
      %p147 = por %p145, %p146
      %p148 = scmp.ne.s32.totalorder %s139, %s140
      %p149 = scmp.eq.s32.totalorder %s21, 0
      %p150 = por %p148, %p149
      %p151 = scmp.ne.s32.totalorder %s139, %s140
      %p152 = scmp.eq.s32.totalorder %s22, 3
      %p153 = por %p151, %p152
      %p155 = scmp.ne.s32.totalorder %s140, %s154
      %p156 = scmp.eq.s32.totalorder %s22, 0
      %p157 = por %p155, %p156
      %s158 = ssub.s32 %s24, %s31
      %p159 = scmp.eq.s32.totalorder %s158, 0
      %s161 = sadd.s32 %s160, 1
      %s162 = scalar_select %p159, %s160, %s161
      %p165 = pneg %p159
      %p166 = scmp.eq.s32.totalorder %s16, 3
      %p167 = por %p165, %p166
      %p168 = scmp.ne.s32.totalorder %s160, %s163
      %p169 = scmp.eq.s32.totalorder %s16, 0
      %p170 = por %p168, %p169
      %p171 = scmp.ne.s32.totalorder %s160, %s163
      %p172 = scmp.eq.s32.totalorder %s21, 3
      %p173 = por %p171, %p172
      %p174 = scmp.ne.s32.totalorder %s163, %s164
      %p175 = scmp.eq.s32.totalorder %s21, 0
      %p176 = por %p174, %p175
      %p177 = scmp.ne.s32.totalorder %s163, %s164
      %p178 = scmp.eq.s32.totalorder %s22, 3
      %p179 = por %p177, %p178
      %p181 = scmp.ne.s32.totalorder %s164, %s180
      %p182 = scmp.eq.s32.totalorder %s22, 0
      %p183 = por %p181, %p182
      %s185 = sadd.s32 %s184, 1
      %p188 = scmp.eq.s32.totalorder %s16, 3
      %p189 = scmp.ne.s32.totalorder %s184, %s186
      %p190 = scmp.eq.s32.totalorder %s16, 0
      %p191 = por %p189, %p190
      %p192 = scmp.ne.s32.totalorder %s184, %s186
      %p193 = scmp.eq.s32.totalorder %s21, 3
      %p194 = por %p192, %p193
      %p195 = scmp.ne.s32.totalorder %s186, %s187
      %p196 = scmp.eq.s32.totalorder %s21, 0
      %p197 = por %p195, %p196
      %p198 = scmp.ne.s32.totalorder %s186, %s187
      %p199 = scmp.eq.s32.totalorder %s22, 3
      %p200 = por %p198, %p199
      %p202 = scmp.ne.s32.totalorder %s187, %s201
      %p203 = scmp.eq.s32.totalorder %s22, 0
      %p204 = por %p202, %p203
      %s206 = sadd.s32 %s205, 1
      %p209 = scmp.eq.s32.totalorder %s16, 3
      %p210 = scmp.ne.s32.totalorder %s205, %s207
      %p211 = scmp.eq.s32.totalorder %s16, 0
      %p212 = por %p210, %p211
      %p213 = scmp.ne.s32.totalorder %s205, %s207
      %p214 = scmp.eq.s32.totalorder %s21, 3
      %p215 = por %p213, %p214
      %p216 = scmp.ne.s32.totalorder %s207, %s208
      %p217 = scmp.eq.s32.totalorder %s21, 0
      %p218 = por %p216, %p217
      %p219 = scmp.ne.s32.totalorder %s207, %s208
      %p220 = scmp.eq.s32.totalorder %s22, 3
      %p221 = por %p219, %p220
      %p223 = scmp.ne.s32.totalorder %s208, %s222
      %p224 = scmp.eq.s32.totalorder %s22, 0
      %p225 = por %p223, %p224
      %s227 = sadd.s32 %s226, 1
      %p230 = scmp.eq.s32.totalorder %s16, 3
      %p231 = scmp.ne.s32.totalorder %s226, %s228
      %p232 = scmp.eq.s32.totalorder %s16, 0
      %p233 = por %p231, %p232
      %p234 = scmp.ne.s32.totalorder %s226, %s228
      %p235 = scmp.eq.s32.totalorder %s21, 3
      %p236 = por %p234, %p235
      %p237 = scmp.ne.s32.totalorder %s228, %s229
      %p238 = scmp.eq.s32.totalorder %s21, 0
      %p239 = por %p237, %p238
      %p240 = scmp.ne.s32.totalorder %s228, %s229
      %p241 = scmp.eq.s32.totalorder %s22, 3
      %p242 = por %p240, %p241
      %p244 = scmp.ne.s32.totalorder %s229, %s243
      %p245 = scmp.eq.s32.totalorder %s22, 0
      %p246 = por %p244, %p245
      %s248 = sadd.s32 %s247, 1
      %p251 = scmp.eq.s32.totalorder %s16, 3
      %p252 = scmp.ne.s32.totalorder %s247, %s249
      %p253 = scmp.eq.s32.totalorder %s16, 0
      %p254 = por %p252, %p253
      %p255 = scmp.ne.s32.totalorder %s247, %s249
      %p256 = scmp.eq.s32.totalorder %s21, 3
      %p257 = por %p255, %p256
      %p258 = scmp.ne.s32.totalorder %s249, %s250
      %p259 = scmp.eq.s32.totalorder %s21, 0
      %p260 = por %p258, %p259
      %p261 = scmp.ne.s32.totalorder %s249, %s250
      %p262 = scmp.eq.s32.totalorder %s22, 3
      %p263 = por %p261, %p262
      %p265 = scmp.ne.s32.totalorder %s250, %s264
      %p266 = scmp.eq.s32.totalorder %s22, 0
      %p267 = por %p265, %p266
      %s268 = ssub.s32 %s24, %s31
      %s269 = ssub.s32 %s23, %s35
      %s270 = sor.u32 %s268, %s269
      %p271 = scmp.eq.s32.totalorder %s270, 0
      %s273 = sadd.s32 %s272, 1
      %s274 = scalar_select %p271, %s272, %s273
      %p277 = pneg %p271
      %p278 = scmp.eq.s32.totalorder %s16, 3
      %p279 = por %p277, %p278
      %p280 = scmp.ne.s32.totalorder %s272, %s275
      %p281 = scmp.eq.s32.totalorder %s16, 0
      %p282 = por %p280, %p281
      %p283 = scmp.ne.s32.totalorder %s272, %s275
      %p284 = scmp.eq.s32.totalorder %s21, 3
      %p285 = por %p283, %p284
      %p286 = scmp.ne.s32.totalorder %s275, %s276
      %p287 = scmp.eq.s32.totalorder %s21, 0
      %p288 = por %p286, %p287
      %p289 = scmp.ne.s32.totalorder %s275, %s276
      %p290 = scmp.eq.s32.totalorder %s22, 3
      %p291 = por %p289, %p290
      %p293 = scmp.ne.s32.totalorder %s276, %s292
      %p294 = scmp.eq.s32.totalorder %s22, 0
      %p295 = por %p293, %p294
      %p296 = scmp.le.s32.totalorder 1, %s16
      %p297 = scmp.lt.s32.totalorder %s16, 5
      %p298 = pnand %p296, %p297
      %p299 = pneg %p298
      // Predicated region
      $region9: #{transport_term_forward.1} parent=5 // pred_check
        _
      $region10: #{transport_term_forward.1} parent=5 // pred_check_branch
        %301 = sbr.rel (%p298) target = $region12
      $region11: #{transport_term_forward.1} parent=5 // pred_region
        %s302 = ssub.s32 %s16, 1
        // Predicated region
        $region13: #{transport_term_forward.1} parent=11 // pred_check
          %p303 = pneg %p129
        $region14: #{transport_term_forward.1} parent=11 // pred_check_branch
          %305 = sbr.rel (%p303) target = $region16
        $region15: #{transport_term_forward.1} parent=11 // pred_region
          _
        $region16: #{transport_term_forward.1} parent=11 // pred_fallthru
          _
        // Predicated region
        $region17: #{transport_term_forward.1} parent=11 // pred_check
          %p306 = pneg %p150
        $region18: #{transport_term_forward.1} parent=11 // pred_check_branch
          %308 = sbr.rel (%p306) target = $region20
        $region19: #{transport_term_forward.1} parent=11 // pred_region
          _
        $region20: #{transport_term_forward.1} parent=11 // pred_fallthru
          _
        // Predicated region
        $region21: #{transport_term_forward.1} parent=11 // pred_check
          %p309 = pneg %p197
        $region22: #{transport_term_forward.1} parent=11 // pred_check_branch
          %311 = sbr.rel (%p309) target = $region24
        $region23: #{transport_term_forward.1} parent=11 // pred_region
          _
        $region24: #{transport_term_forward.1} parent=11 // pred_fallthru
          _
        // Predicated region
        $region25: #{transport_term_forward.1} parent=11 // pred_check
          %p312 = pneg %p218
        $region26: #{transport_term_forward.1} parent=11 // pred_check_branch
          %314 = sbr.rel (%p312) target = $region28
        $region27: #{transport_term_forward.1} parent=11 // pred_region
          _
        $region28: #{transport_term_forward.1} parent=11 // pred_fallthru
          _
        // Predicated region
        $region29: #{transport_term_forward.1} parent=11 // pred_check
          %p315 = pneg %p239
        $region30: #{transport_term_forward.1} parent=11 // pred_check_branch
          %317 = sbr.rel (%p315) target = $region32
        $region31: #{transport_term_forward.1} parent=11 // pred_region
          _
        $region32: #{transport_term_forward.1} parent=11 // pred_fallthru
          _
        // Predicated region
        $region33: #{transport_term_forward.1} parent=11 // pred_check
          %p318 = pneg %p260
        $region34: #{transport_term_forward.1} parent=11 // pred_check_branch
          %320 = sbr.rel (%p318) target = $region36
        $region35: #{transport_term_forward.1} parent=11 // pred_region
          _
        $region36: #{transport_term_forward.1} parent=11 // pred_fallthru
          _
      $region12: #{transport_term_forward.1} parent=5 // pred_fallthru
        _
      %p321 = scmp.lt.s32.totalorder %s16, 4
      // Predicated region
      $region37: #{transport_term_forward.1} parent=5 // pred_check
        %p322 = pneg %p321
      $region38: #{transport_term_forward.1} parent=5 // pred_check_branch
        %324 = sbr.rel (%p322) target = $region40
      $region39: #{transport_term_forward.1} parent=5 // pred_region
        // Predicated region
        $region41: #{transport_term_forward.1} parent=39 // pred_check
          %p325 = pneg %p48
        $region42: #{transport_term_forward.1} parent=39 // pred_check_branch
          %327 = sbr.rel (%p325) target = $region44
        $region43: #{transport_term_forward.1} parent=39 // pred_region
          %s328 = smul.u32 2, %s23
          %p329 = scmp.lt.s32.totalorder %s328, 3
          %s330 = scalar_select %p329, %s328, 3
          %s331 = smul.addr %s330, 8
          %s332 = scalar_lea.vmem %s0, %s331
          %s333 = smul.u32 2, %s23
        $region44: #{transport_term_forward.1} parent=39 // pred_fallthru
          _
        // Predicated region
        $region45: #{transport_term_forward.1} parent=39 // pred_check
          %p334 = pneg %p76
        $region46: #{transport_term_forward.1} parent=39 // pred_check_branch
          %336 = sbr.rel (%p334) target = $region48
        $region47: #{transport_term_forward.1} parent=39 // pred_region
          %s337 = sand.u32 %s66, 1
          %s338 = sand.u32 %s66, 1
          %s339 = smul.addr %s338, 32
          %s340 = scalar_lea.vmem [#allocation2], %s339
          %s341 = smul.u32 2, %s23
          %s342 = smul.addr %s24, 8
          %s343 = sadd.s32 %s341, %s342
          %s344 = smul.addr %s343, 8
          %s345 = scalar_lea.vmem %s1, %s344
          // Predicated region
          $region49: #{transport_term_forward.1} parent=47 // pred_check
            _
          $region50: #{transport_term_forward.1} parent=47 // pred_check_branch
            %347 = sbr.rel (0) target = $region52
          $region51: #{transport_term_forward.1} parent=47 // pred_region
            // Predicated region
            $region53: #{transport_term_forward.1} parent=51 // pred_check
              _
            $region54: #{transport_term_forward.1} parent=51 // pred_check_branch
              %349 = sbr.rel (0) target = $region56
            $region55: #{transport_term_forward.1} parent=51 // pred_region
              loop: start=0, step=1, limit=1
              $region57: #{transport_term_forward.1} parent=55 // loop_pre_header
                _
              $region58: #{transport_term_forward.1} parent=55 // loop_header
                %s351 = sphi 0, %s355
                %p352 = scmp.ge.s32.totalorder %s351, 1
                %s356 = sphi %s345, %s345
                %s357 = sphi %s340, %s340
              $region59: #{transport_term_forward.1} parent=55 // loop_header_branch
                %354 = sbr.rel (%p352) target = $region63
              $region60: #{transport_term_forward.1} parent=55 // loop_body
                %v358 = vld [vmem:[%s356] sm:$0xff]
                %359 = vst [vmem:[%s357] sm:$0xff] %v358
                %v360 = vld [vmem:[%s356 + $0x8] sm:$0xff]
                %361 = vst [vmem:[%s357 + $0x8] sm:$0xff] %v360
                %v362 = vld [vmem:[%s356 + $0x20] sm:$0xff]
                %363 = vst [vmem:[%s357 + $0x10] sm:$0xff] %v362
                %v364 = vld [vmem:[%s356 + $0x28] sm:$0xff]
                %365 = vst [vmem:[%s357 + $0x18] sm:$0xff] %v364
              $region61: #{transport_term_forward.1} parent=55 // loop_footer
                %s355 = sadd.s32 1, %s351
              $region62: #{transport_term_forward.1} parent=55 // loop_footer_branch
                %350 = sbr.rel target = $region58
              $region63: #{transport_term_forward.1} parent=55 // loop_exit
                _
            $region56: #{transport_term_forward.1} parent=51 // pred_fallthru
              _
            // Predicated region
            $region64: #{transport_term_forward.1} parent=51 // pred_check
              _
            $region65: #{transport_term_forward.1} parent=51 // pred_check_branch
              %367 = sbr.rel target = $region67
            $region66: #{transport_term_forward.1} parent=51 // pred_region
              _
            $region67: #{transport_term_forward.1} parent=51 // pred_fallthru
              _
          $region52: #{transport_term_forward.1} parent=47 // pred_fallthru
            _
          %368 = vnop
        $region48: #{transport_term_forward.1} parent=39 // pred_fallthru
          _
        // Predicated region
        $region68: #{transport_term_forward.1} parent=39 // pred_check
          %p369 = pneg %p102
        $region69: #{transport_term_forward.1} parent=39 // pred_check_branch
          %371 = sbr.rel (%p369) target = $region71
        $region70: #{transport_term_forward.1} parent=39 // pred_region
          %s372 = sand.u32 %s92, 1
          %s373 = sand.u32 %s92, 1
          %s374 = smul.addr %s373, 48
          %s375 = scalar_lea.vmem [#allocation3], %s374
          %s376 = smul.u32 2, %s23
          %s377 = smul.addr %s376, 8
          %s378 = scalar_lea.vmem %s2, %s377
          // Predicated region
          $region72: #{transport_term_forward.1} parent=70 // pred_check
            _
          $region73: #{transport_term_forward.1} parent=70 // pred_check_branch
            %380 = sbr.rel (0) target = $region75
          $region74: #{transport_term_forward.1} parent=70 // pred_region
            // Predicated region
            $region76: #{transport_term_forward.1} parent=74 // pred_check
              _
            $region77: #{transport_term_forward.1} parent=74 // pred_check_branch
              %382 = sbr.rel (0) target = $region79
            $region78: #{transport_term_forward.1} parent=74 // pred_region
              loop: start=0, step=1, limit=1
              $region80: #{transport_term_forward.1} parent=78 // loop_pre_header
                _
              $region81: #{transport_term_forward.1} parent=78 // loop_header
                %s384 = sphi 0, %s388
                %p385 = scmp.ge.s32.totalorder %s384, 1
                %s389 = sphi %s378, %s378
                %s390 = sphi %s375, %s375
              $region82: #{transport_term_forward.1} parent=78 // loop_header_branch
                %387 = sbr.rel (%p385) target = $region86
              $region83: #{transport_term_forward.1} parent=78 // loop_body
                %v391 = vld [vmem:[%s389] sm:$0xff]
                %392 = vst [vmem:[%s390] sm:$0xff] %v391
                %v393 = vld [vmem:[%s389 + $0x8] sm:$0xff]
                %394 = vst [vmem:[%s390 + $0x8] sm:$0xff] %v393
                %v395 = vld [vmem:[%s389 + $0x20] sm:$0xff]
                %396 = vst [vmem:[%s390 + $0x10] sm:$0xff] %v395
                %v397 = vld [vmem:[%s389 + $0x28] sm:$0xff]
                %398 = vst [vmem:[%s390 + $0x18] sm:$0xff] %v397
                %v399 = vld [vmem:[%s389 + $0x40] sm:$0xff]
                %400 = vst [vmem:[%s390 + $0x20] sm:$0xff] %v399
                %v401 = vld [vmem:[%s389 + $0x48] sm:$0xff]
                %402 = vst [vmem:[%s390 + $0x28] sm:$0xff] %v401
              $region84: #{transport_term_forward.1} parent=78 // loop_footer
                %s388 = sadd.s32 1, %s384
              $region85: #{transport_term_forward.1} parent=78 // loop_footer_branch
                %383 = sbr.rel target = $region81
              $region86: #{transport_term_forward.1} parent=78 // loop_exit
                _
            $region79: #{transport_term_forward.1} parent=74 // pred_fallthru
              _
            // Predicated region
            $region87: #{transport_term_forward.1} parent=74 // pred_check
              _
            $region88: #{transport_term_forward.1} parent=74 // pred_check_branch
              %404 = sbr.rel target = $region90
            $region89: #{transport_term_forward.1} parent=74 // pred_region
              _
            $region90: #{transport_term_forward.1} parent=74 // pred_fallthru
              _
          $region75: #{transport_term_forward.1} parent=70 // pred_fallthru
            _
          %405 = vnop
        $region71: #{transport_term_forward.1} parent=39 // pred_fallthru
          _
        // Predicated region
        $region91: #{transport_term_forward.1} parent=39 // pred_check
          %p406 = pneg %p170
        $region92: #{transport_term_forward.1} parent=39 // pred_check_branch
          %408 = sbr.rel (%p406) target = $region94
        $region93: #{transport_term_forward.1} parent=39 // pred_region
          %p409 = scmp.lt.s32.totalorder %s24, 1
          %s410 = scalar_select %p409, %s24, 1
          %s411 = smul.addr %s410, 4
          %s412 = smul.addr %s411, 8
          %s413 = scalar_lea.vmem %s5, %s412
        $region94: #{transport_term_forward.1} parent=39 // pred_fallthru
          _
      $region40: #{transport_term_forward.1} parent=5 // pred_fallthru
        _
      %p414 = scmp.le.s32.totalorder 1, %s16
      %p415 = scmp.lt.s32.totalorder %s16, 5
      %p416 = pnand %p414, %p415
      %p417 = pneg %p416
      // Predicated region
      $region95: #{transport_term_forward.1} parent=5 // pred_check
        _
      $region96: #{transport_term_forward.1} parent=5 // pred_check_branch
        %419 = sbr.rel (%p416) target = $region98
      $region97: #{transport_term_forward.1} parent=5 // pred_region
        %s420 = ssub.s32 %s16, 1
        %s421 = sand.u32 %s69, 1
        %s422 = sand.u32 %s69, 1
        %s423 = smul.addr %s422, 32
        %s424 = scalar_lea.vmem [#allocation2], %s423
        // Predicated region
        $region99: #{transport_term_forward.1} parent=97 // pred_check
          %p425 = pneg %p82
        $region100: #{transport_term_forward.1} parent=97 // pred_check_branch
          %427 = sbr.rel (%p425) target = $region102
        $region101: #{transport_term_forward.1} parent=97 // pred_region
          _
        $region102: #{transport_term_forward.1} parent=97 // pred_fallthru
          _
        %s428 = sand.u32 %s95, 1
        %s429 = sand.u32 %s95, 1
        %s430 = smul.addr %s429, 48
        %s431 = scalar_lea.vmem [#allocation3], %s430
        // Predicated region
        $region103: #{transport_term_forward.1} parent=97 // pred_check
          %p432 = pneg %p108
        $region104: #{transport_term_forward.1} parent=97 // pred_check_branch
          %434 = sbr.rel (%p432) target = $region106
        $region105: #{transport_term_forward.1} parent=97 // pred_region
          _
        $region106: #{transport_term_forward.1} parent=97 // pred_fallthru
          _
        %s435 = smul.u32 2, %s25
        %p436 = scmp.lt.s32.totalorder %s435, 3
        %s437 = scalar_select %p436, %s435, 3
        %s438 = smul.addr %s437, 8
        %s439 = scalar_lea.vmem %s0, %s438
        %p440 = pneg %p54
        %p441 = pneg %p51
        %s442 = sand.u32 %s69, 1
        %s443 = sand.u32 %s69, 1
        %s444 = smul.addr %s443, 32
        %s445 = scalar_lea.vmem [#allocation2], %s444
        %p446 = pneg %p82
        %p447 = pneg %p79
        %s448 = sand.u32 %s95, 1
        %s449 = sand.u32 %s95, 1
        %s450 = smul.addr %s449, 48
        %s451 = scalar_lea.vmem [#allocation3], %s450
        %p452 = pneg %p108
        %p453 = pneg %p105
        %p454 = pneg %p129
        %p455 = pneg %p126
        %p456 = pneg %p150
        %p457 = pneg %p147
        %p458 = scmp.lt.s32.totalorder %s26, 1
        %s459 = scalar_select %p458, %s26, 1
        %s460 = smul.addr %s459, 4
        %s461 = smul.addr %s460, 8
        %s462 = scalar_lea.vmem %s5, %s461
        %p463 = pneg %p176
        %p464 = pneg %p173
        %p465 = pneg %p197
        %p466 = pneg %p194
        %p467 = pneg %p218
        %p468 = pneg %p215
        %p469 = pneg %p239
        %p470 = pneg %p236
        %p471 = pneg %p260
        %p472 = pneg %p257
        %p473 = pneg %p288
        %p474 = pneg %p285
        %s475 = sand.u32 %s275, 1
        %s476 = sand.u32 %s275, 1
        %s477 = smul.addr %s476, 32
        %s478 = scalar_lea.vmem [#allocation4], %s477
        %s479 = smul.u32 2, %s25
        %p480 = scmp.lt.s32.totalorder %s479, 3
        %s481 = scalar_select %p480, %s479, 3
        %s482 = smul.addr %s481, 8
        %s483 = scalar_lea.vmem %s0, %s482
        %s484 = smul.u32 2, %s25
        %s485 = smul.u32 2, %s25
        %s486 = smul.u32 2, %s25
        %p487 = scmp.lt.s32.totalorder %s26, 1
        %s488 = scalar_select %p487, %s26, 1
        %s489 = smul.addr %s488, 4
        %s490 = smul.addr %s489, 8
        %s491 = scalar_lea.vmem %s5, %s490
        %s492 = smul.u32 2, %s25
        %v493 = vld [vmem:[%s424] sm:$0xff]
        %v494 = vld [vmem:[%s424 + $0x8] sm:$0xff]
        %v495 = vld [vmem:[%s424 + $0x10] sm:$0xf]
        %v496 = vld [vmem:[%s424 + $0x18] sm:$0xf]
        %v497 = vld [vmem:[%s483] sm:$0xff]
        %v498 = vld [vmem:[%s483 + $0x8] sm:$0xff]
        %v499 = vld [vmem:[%s431] sm:$0xff]
        %v500 = vld [vmem:[%s431 + $0x8] sm:$0xff]
        %v501 = vld [vmem:[%s431 + $0x10] sm:$0xff]
        %v502 = vld [vmem:[%s431 + $0x18] sm:$0xff]
        %v503 = vld [vmem:[%s431 + $0x20] sm:$0x3]
        %v504 = vld [vmem:[%s431 + $0x28] sm:$0x3]
        %v505 = vld [vmem:[%s3] sm:$0xff]
        %v506 = vld [vmem:[%s3 + $0x8] sm:$0xff]
        %v507 = vld [vmem:[%s3 + $0x10] sm:$0xff]
        %v508 = vld [vmem:[%s3 + $0x18] sm:$0xff]
        %v509 = vld [vmem:[%s4] sm:$0xff]
        %v510 = vld [vmem:[%s4 + $0x8] sm:$0xff]
        %v511 = vld [vmem:[%s4 + $0x10] sm:$0xff]
        %v512 = vld [vmem:[%s4 + $0x18] sm:$0xff]
        %vm513 = vcmask 97280
        %v515 = vsel %vm513, %v509, 0
        %v518 = vsel %vm513, %v510, 0
        %v521 = vsel %vm513, %v511, 0
        %v524 = vsel %vm513, %v512, 0
        %vm526 = vcmask 1043456
        %v528 = vsel %vm526, %v495, 0
        %v531 = vsel %vm526, %v496, 0
        %533 = vmatprep.subr.mxu0 %v494
        %534 = vmatpush1.msra.mxu0 %v493
        %535 = vmatprep.subr.mxu0 %v531
        %536 = vmatpush1.msra.mxu0 %v528
        %537 = vmatprep.subr.mxu0 0.0
        %538 = vmatpush1.msra.mxu0 0.0
        %539 = vmatprep.subr.mxu0 0.0
        %540 = vmatpush1.msra.mxu0 0.0
        %541 = vmatprep.subr.mxu0 0.0
        %542 = vmatpush1.msra.mxu0 0.0
        %543 = vmatprep.subr.mxu0 0.0
        %544 = vmatpush1.msra.mxu0 0.0
        %545 = vmatprep.subr.mxu0 0.0
        %546 = vmatpush1.msra.mxu0 0.0
        %547 = vmatprep.subr.mxu0 0.0
        %548 = vmatpush1.msra.mxu0 0.0
        %549 = vmatprep.subr.mxu0 0.0
        %550 = vmatpush1.msra.mxu0 0.0
        %551 = vmatprep.subr.mxu0 0.0
        %552 = vmatpush1.msra.mxu0 0.0
        %553 = vmatprep.subr.mxu0 0.0
        %554 = vmatpush1.msra.mxu0 0.0
        %555 = vmatprep.subr.mxu0 0.0
        %556 = vmatpush1.msra.mxu0 0.0
        %557 = vmatprep.subr.mxu0 0.0
        %558 = vmatpush1.msra.mxu0 0.0
        %559 = vmatprep.subr.mxu0 0.0
        %560 = vmatpush1.msra.mxu0 0.0
        %561 = vmatprep.subr.mxu0 0.0
        %562 = vmatpush1.msra.mxu0 0.0
        %563 = vmatprep.subr.mxu0 0.0
        %564 = vmatpush1.msra.mxu0 0.0
        %565 = vmatprep.subr.mxu0 0.0
        %566 = vmatpush1.msra.mxu0 0.0
        %567 = vmatprep.subr.mxu0 0.0
        %568 = vmatpush1.msra.mxu0 0.0
        %569 = vmatprep.subr.mxu0 0.0
        %570 = vmatpush1.msra.mxu0 0.0
        %571 = vmatprep.subr.mxu0 0.0
        %572 = vmatpush1.msra.mxu0 0.0
        %573 = vmatprep.subr.mxu0 0.0
        %574 = vmatpush1.msra.mxu0 0.0
        %575 = vmatprep.subr.mxu0 0.0
        %576 = vmatpush1.msra.mxu0 0.0
        %577 = vmatprep.subr.mxu0 0.0
        %578 = vmatpush1.msra.mxu0 0.0
        %579 = vmatprep.subr.mxu0 0.0
        %580 = vmatpush1.msra.mxu0 0.0
        %581 = vmatprep.subr.mxu0 0.0
        %582 = vmatpush1.msra.mxu0 0.0
        %583 = vmatprep.subr.mxu0 0.0
        %584 = vmatpush1.msra.mxu0 0.0
        %585 = vmatprep.subr.mxu0 0.0
        %586 = vmatpush1.msra.mxu0 0.0
        %587 = vmatprep.subr.mxu0 0.0
        %588 = vmatpush1.msra.mxu0 0.0
        %589 = vmatprep.subr.mxu0 0.0
        %590 = vmatpush1.msra.mxu0 0.0
        %591 = vmatprep.subr.mxu0 0.0
        %592 = vmatpush1.msra.mxu0 0.0
        %593 = vmatprep.subr.mxu0 0.0
        %594 = vmatpush1.msra.mxu0 0.0
        %595 = vmatprep.subr.mxu0 0.0
        %596 = vmatpush1.msra.mxu0 0.0
        %597 = vmatprep.mubr.f32.mxu0 0.0
        %598 = vmatmul.mubr.f32.gmra.mrb[0].mxu0 %v515
        %v599 = vpop.f32.mrb[0].mxu0
        %v600 = vadd.f32 0.0, %v599
        %v601 = vpop.f32.mrb[0].mxu0
        %v602 = vadd.f32 0.0, %v601
        %603 = vmatprep.mubr.f32.mxu0 0.0
        %604 = vmatmul.mubr.f32.gmra.mrb[0].mxu0 %v518
        %v605 = vpop.f32.mrb[0].mxu0
        %v606 = vadd.f32 0.0, %v605
        %v607 = vpop.f32.mrb[0].mxu0
        %v608 = vadd.f32 0.0, %v607
        %609 = vmatprep.mubr.f32.mxu0 0.0
        %610 = vmatmul.mubr.f32.gmra.mrb[0].mxu0 %v521
        %v611 = vpop.f32.mrb[0].mxu0
        %v612 = vadd.f32 0.0, %v611
        %v613 = vpop.f32.mrb[0].mxu0
        %v614 = vadd.f32 0.0, %v613
        %615 = vmatprep.mubr.f32.mxu0 0.0
        %616 = vmatmul.mubr.f32.gmra.mrb[0].mxu0 %v524
        %v617 = vpop.f32.mrb[0].mxu0
        %v618 = vadd.f32 0.0, %v617
        %v619 = vpop.f32.mrb[0].mxu0
        %v620 = vadd.f32 0.0, %v619
        %621 = vdwg.mxu0
        %vm622 = vcmask 64512
        %v624 = vsel %vm622, %v505, 0
        %v627 = vsel %vm622, %v506, 0
        %v630 = vsel %vm622, %v507, 0
        %v633 = vsel %vm622, %v508, 0
        %635 = vmatprep.subr.mxu0 %v498
        %636 = vmatpush1.msra.mxu0 %v497
        %637 = vmatprep.subr.mxu0 0.0
        %638 = vmatpush1.msra.mxu0 0.0
        %639 = vmatprep.subr.mxu0 0.0
        %640 = vmatpush1.msra.mxu0 0.0
        %641 = vmatprep.subr.mxu0 0.0
        %642 = vmatpush1.msra.mxu0 0.0
        %643 = vmatprep.subr.mxu0 0.0
        %644 = vmatpush1.msra.mxu0 0.0
        %645 = vmatprep.subr.mxu0 0.0
        %646 = vmatpush1.msra.mxu0 0.0
        %647 = vmatprep.subr.mxu0 0.0
        %648 = vmatpush1.msra.mxu0 0.0
        %649 = vmatprep.subr.mxu0 0.0
        %650 = vmatpush1.msra.mxu0 0.0
        %651 = vmatprep.subr.mxu0 0.0
        %652 = vmatpush1.msra.mxu0 0.0
        %653 = vmatprep.subr.mxu0 0.0
        %654 = vmatpush1.msra.mxu0 0.0
        %655 = vmatprep.subr.mxu0 0.0
        %656 = vmatpush1.msra.mxu0 0.0
        %657 = vmatprep.subr.mxu0 0.0
        %658 = vmatpush1.msra.mxu0 0.0
        %659 = vmatprep.subr.mxu0 0.0
        %660 = vmatpush1.msra.mxu0 0.0
        %661 = vmatprep.subr.mxu0 0.0
        %662 = vmatpush1.msra.mxu0 0.0
        %663 = vmatprep.subr.mxu0 0.0
        %664 = vmatpush1.msra.mxu0 0.0
        %665 = vmatprep.subr.mxu0 0.0
        %666 = vmatpush1.msra.mxu0 0.0
        %667 = vmatprep.subr.mxu0 0.0
        %668 = vmatpush1.msra.mxu0 0.0
        %669 = vmatprep.subr.mxu0 0.0
        %670 = vmatpush1.msra.mxu0 0.0
        %671 = vmatprep.subr.mxu0 0.0
        %672 = vmatpush1.msra.mxu0 0.0
        %673 = vmatprep.subr.mxu0 0.0
        %674 = vmatpush1.msra.mxu0 0.0
        %675 = vmatprep.subr.mxu0 0.0
        %676 = vmatpush1.msra.mxu0 0.0
        %677 = vmatprep.subr.mxu0 0.0
        %678 = vmatpush1.msra.mxu0 0.0
        %679 = vmatprep.subr.mxu0 0.0
        %680 = vmatpush1.msra.mxu0 0.0
        %681 = vmatprep.subr.mxu0 0.0
        %682 = vmatpush1.msra.mxu0 0.0
        %683 = vmatprep.subr.mxu0 0.0
        %684 = vmatpush1.msra.mxu0 0.0
        %685 = vmatprep.subr.mxu0 0.0
        %686 = vmatpush1.msra.mxu0 0.0
        %687 = vmatprep.subr.mxu0 0.0
        %688 = vmatpush1.msra.mxu0 0.0
        %689 = vmatprep.subr.mxu0 0.0
        %690 = vmatpush1.msra.mxu0 0.0
        %691 = vmatprep.subr.mxu0 0.0
        %692 = vmatpush1.msra.mxu0 0.0
        %693 = vmatprep.subr.mxu0 0.0
        %694 = vmatpush1.msra.mxu0 0.0
        %695 = vmatprep.subr.mxu0 0.0
        %696 = vmatpush1.msra.mxu0 0.0
        %697 = vmatprep.subr.mxu0 0.0
        %698 = vmatpush1.msra.mxu0 0.0
        %699 = vmatprep.mubr.f32.mxu0 0.0
        %700 = vmatmul.mubr.f32.gmra.mrb[0].mxu0 %v624
        %v701 = vpop.f32.mrb[0].mxu0
        %v702 = vadd.f32 %v600, %v701
        %v703 = vpop.f32.mrb[0].mxu0
        %v704 = vadd.f32 %v602, %v703
        %705 = vmatprep.mubr.f32.mxu0 0.0
        %706 = vmatmul.mubr.f32.gmra.mrb[0].mxu0 %v627
        %v707 = vpop.f32.mrb[0].mxu0
        %v708 = vadd.f32 %v606, %v707
        %v709 = vpop.f32.mrb[0].mxu0
        %v710 = vadd.f32 %v608, %v709
        %711 = vmatprep.mubr.f32.mxu0 0.0
        %712 = vmatmul.mubr.f32.gmra.mrb[0].mxu0 %v630
        %v713 = vpop.f32.mrb[0].mxu0
        %v714 = vadd.f32 %v612, %v713
        %v715 = vpop.f32.mrb[0].mxu0
        %v716 = vadd.f32 %v614, %v715
        %717 = vmatprep.mubr.f32.mxu0 0.0
        %718 = vmatmul.mubr.f32.gmra.mrb[0].mxu0 %v633
        %v719 = vpop.f32.mrb[0].mxu0
        %v720 = vadd.f32 %v618, %v719
        %v721 = vpop.f32.mrb[0].mxu0
        %v722 = vadd.f32 %v620, %v721
        %723 = vdwg.mxu0
        %v724 = vld [vmem:[%s491] sm:$0xff]
        %v725 = vld [vmem:[%s491 + $0x8] sm:$0xff]
        %v726 = vld [vmem:[%s491 + $0x10] sm:$0xff]
        %v727 = vld [vmem:[%s491 + $0x18] sm:$0xff]
        %729 = vset.pattern.permute.xlu0 0
        %730 = vperm.xlu0 %729, %v724
        %v731 = vpop.permute.xlu0 %730
        %734 = vset.pattern.permute.xlu0 0
        %735 = vperm.xlu0 %734, %v725
        %v736 = vpop.permute.xlu0 %735
        %739 = vset.pattern.permute.xlu0 0
        %740 = vperm.xlu0 %739, %v726
        %v741 = vpop.permute.xlu0 %740
        %744 = vset.pattern.permute.xlu0 0
        %745 = vperm.xlu0 %744, %v727
        %v746 = vpop.permute.xlu0 %745
        %v748 = vadd.f32 %v702, %v731
        %v749 = vadd.f32 %v704, %v731
        %v750 = vadd.f32 %v708, %v736
        %v751 = vadd.f32 %v710, %v736
        %v752 = vadd.f32 %v714, %v741
        %v753 = vadd.f32 %v716, %v741
        %v754 = vadd.f32 %v720, %v746
        %v755 = vadd.f32 %v722, %v746
        %v756 = vtanh.pop %v748
        %v757 = vtanh.pop %v749
        %v758 = vtanh.pop %v750
        %v759 = vtanh.pop %v751
        %v760 = vtanh.pop %v752
        %v761 = vtanh.pop %v753
        %v762 = vtanh.pop %v754
        %v763 = vtanh.pop %v755
        %v764 = vld [vmem:[%s6] sm:$0xff]
        %v765 = vld [vmem:[%s6 + $0x8] sm:$0xff]
        %v766 = vld [vmem:[%s6 + $0x10] sm:$0xff]
        %v767 = vld [vmem:[%s6 + $0x18] sm:$0xff]
        %v768 = vld [vmem:[%s7] sm:$0xff]
        %v769 = vld [vmem:[%s7 + $0x8] sm:$0xff]
        %v770 = vld [vmem:[%s7 + $0x10] sm:$0xff]
        %v771 = vld [vmem:[%s7 + $0x18] sm:$0xff]
        %773 = vset.pattern.permute.xlu0 0
        %774 = vperm.xlu0 %773, %v768
        %v775 = vpop.permute.xlu0 %774
        %778 = vset.pattern.permute.xlu0 0
        %779 = vperm.xlu0 %778, %v769
        %v780 = vpop.permute.xlu0 %779
        %783 = vset.pattern.permute.xlu0 0
        %784 = vperm.xlu0 %783, %v770
        %v785 = vpop.permute.xlu0 %784
        %788 = vset.pattern.permute.xlu0 0
        %789 = vperm.xlu0 %788, %v771
        %v790 = vpop.permute.xlu0 %789
        %vm792 = vcmask 261120
        %v794 = vsel %vm792, %v764, 0
        %v797 = vsel %vm792, %v765, 0
        %v800 = vsel %vm792, %v766, 0
        %v803 = vsel %vm792, %v767, 0
        %805 = vmatprep.subr.mxu0 %v757
        %806 = vmatpush1.msra.mxu0 %v756
        %807 = vmatprep.subr.mxu0 %v759
        %808 = vmatpush1.msra.mxu0 %v758
        %809 = vmatprep.subr.mxu0 %v761
        %810 = vmatpush1.msra.mxu0 %v760
        %811 = vmatprep.subr.mxu0 %v763
        %812 = vmatpush1.msra.mxu0 %v762
        %813 = vmatprep.subr.mxu0 0.0
        %814 = vmatpush1.msra.mxu0 0.0
        %815 = vmatprep.subr.mxu0 0.0
        %816 = vmatpush1.msra.mxu0 0.0
        %817 = vmatprep.subr.mxu0 0.0
        %818 = vmatpush1.msra.mxu0 0.0
        %819 = vmatprep.subr.mxu0 0.0
        %820 = vmatpush1.msra.mxu0 0.0
        %821 = vmatprep.subr.mxu0 0.0
        %822 = vmatpush1.msra.mxu0 0.0
        %823 = vmatprep.subr.mxu0 0.0
        %824 = vmatpush1.msra.mxu0 0.0
        %825 = vmatprep.subr.mxu0 0.0
        %826 = vmatpush1.msra.mxu0 0.0
        %827 = vmatprep.subr.mxu0 0.0
        %828 = vmatpush1.msra.mxu0 0.0
        %829 = vmatprep.subr.mxu0 0.0
        %830 = vmatpush1.msra.mxu0 0.0
        %831 = vmatprep.subr.mxu0 0.0
        %832 = vmatpush1.msra.mxu0 0.0
        %833 = vmatprep.subr.mxu0 0.0
        %834 = vmatpush1.msra.mxu0 0.0
        %835 = vmatprep.subr.mxu0 0.0
        %836 = vmatpush1.msra.mxu0 0.0
        %837 = vmatprep.subr.mxu0 0.0
        %838 = vmatpush1.msra.mxu0 0.0
        %839 = vmatprep.subr.mxu0 0.0
        %840 = vmatpush1.msra.mxu0 0.0
        %841 = vmatprep.subr.mxu0 0.0
        %842 = vmatpush1.msra.mxu0 0.0
        %843 = vmatprep.subr.mxu0 0.0
        %844 = vmatpush1.msra.mxu0 0.0
        %845 = vmatprep.subr.mxu0 0.0
        %846 = vmatpush1.msra.mxu0 0.0
        %847 = vmatprep.subr.mxu0 0.0
        %848 = vmatpush1.msra.mxu0 0.0
        %849 = vmatprep.subr.mxu0 0.0
        %850 = vmatpush1.msra.mxu0 0.0
        %851 = vmatprep.subr.mxu0 0.0
        %852 = vmatpush1.msra.mxu0 0.0
        %853 = vmatprep.subr.mxu0 0.0
        %854 = vmatpush1.msra.mxu0 0.0
        %855 = vmatprep.subr.mxu0 0.0
        %856 = vmatpush1.msra.mxu0 0.0
        %857 = vmatprep.subr.mxu0 0.0
        %858 = vmatpush1.msra.mxu0 0.0
        %859 = vmatprep.subr.mxu0 0.0
        %860 = vmatpush1.msra.mxu0 0.0
        %861 = vmatprep.subr.mxu0 0.0
        %862 = vmatpush1.msra.mxu0 0.0
        %863 = vmatprep.subr.mxu0 0.0
        %864 = vmatpush1.msra.mxu0 0.0
        %865 = vmatprep.subr.mxu0 0.0
        %866 = vmatpush1.msra.mxu0 0.0
        %867 = vmatprep.subr.mxu0 0.0
        %868 = vmatpush1.msra.mxu0 0.0
        %869 = vmatprep.mubr.f32.mxu0 0.0
        %870 = vmatmul.mubr.f32.gmra.mrb[0].mxu0 %v794
        %v871 = vpop.f32.mrb[0].mxu0
        %v872 = vadd.f32 %v775, %v871
        %v873 = vpop.f32.mrb[0].mxu0
        %v874 = vadd.f32 %v775, %v873
        %875 = vmatprep.mubr.f32.mxu0 0.0
        %876 = vmatmul.mubr.f32.gmra.mrb[0].mxu0 %v797
        %v877 = vpop.f32.mrb[0].mxu0
        %v878 = vadd.f32 %v780, %v877
        %v879 = vpop.f32.mrb[0].mxu0
        %v880 = vadd.f32 %v780, %v879
        %881 = vmatprep.mubr.f32.mxu0 0.0
        %882 = vmatmul.mubr.f32.gmra.mrb[0].mxu0 %v800
        %v883 = vpop.f32.mrb[0].mxu0
        %v884 = vadd.f32 %v785, %v883
        %v885 = vpop.f32.mrb[0].mxu0
        %v886 = vadd.f32 %v785, %v885
        %887 = vmatprep.mubr.f32.mxu0 0.0
        %888 = vmatmul.mubr.f32.gmra.mrb[0].mxu0 %v803
        %v889 = vpop.f32.mrb[0].mxu0
        %v890 = vadd.f32 %v790, %v889
        %v891 = vpop.f32.mrb[0].mxu0
        %v892 = vadd.f32 %v790, %v891
        %893 = vdwg.mxu0
        %v894 = vtanh.pop %v872
        %v895 = vtanh.pop %v874
        %v896 = vtanh.pop %v878
        %v897 = vtanh.pop %v880
        %v898 = vtanh.pop %v884
        %v899 = vtanh.pop %v886
        %v900 = vtanh.pop %v890
        %v901 = vtanh.pop %v892
        %v902 = vld [vmem:[%s8] sm:$0xff]
        %v903 = vld [vmem:[%s9] sm:$0xff]
        %905 = vset.pattern.permute.xlu0 0
        %906 = vperm.xlu0 %905, %v903
        %v907 = vpop.permute.xlu0 %906
        %v910 = vsel %vm792, %v902, 0
        %912 = vmatprep.subr.mxu0 %v895
        %913 = vmatpush1.msra.mxu0 %v894
        %914 = vmatprep.subr.mxu0 %v897
        %915 = vmatpush1.msra.mxu0 %v896
        %916 = vmatprep.subr.mxu0 %v899
        %917 = vmatpush1.msra.mxu0 %v898
        %918 = vmatprep.subr.mxu0 %v901
        %919 = vmatpush1.msra.mxu0 %v900
        %920 = vmatprep.subr.mxu0 0.0
        %921 = vmatpush1.msra.mxu0 0.0
        %922 = vmatprep.subr.mxu0 0.0
        %923 = vmatpush1.msra.mxu0 0.0
        %924 = vmatprep.subr.mxu0 0.0
        %925 = vmatpush1.msra.mxu0 0.0
        %926 = vmatprep.subr.mxu0 0.0
        %927 = vmatpush1.msra.mxu0 0.0
        %928 = vmatprep.subr.mxu0 0.0
        %929 = vmatpush1.msra.mxu0 0.0
        %930 = vmatprep.subr.mxu0 0.0
        %931 = vmatpush1.msra.mxu0 0.0
        %932 = vmatprep.subr.mxu0 0.0
        %933 = vmatpush1.msra.mxu0 0.0
        %934 = vmatprep.subr.mxu0 0.0
        %935 = vmatpush1.msra.mxu0 0.0
        %936 = vmatprep.subr.mxu0 0.0
        %937 = vmatpush1.msra.mxu0 0.0
        %938 = vmatprep.subr.mxu0 0.0
        %939 = vmatpush1.msra.mxu0 0.0
        %940 = vmatprep.subr.mxu0 0.0
        %941 = vmatpush1.msra.mxu0 0.0
        %942 = vmatprep.subr.mxu0 0.0
        %943 = vmatpush1.msra.mxu0 0.0
        %944 = vmatprep.subr.mxu0 0.0
        %945 = vmatpush1.msra.mxu0 0.0
        %946 = vmatprep.subr.mxu0 0.0
        %947 = vmatpush1.msra.mxu0 0.0
        %948 = vmatprep.subr.mxu0 0.0
        %949 = vmatpush1.msra.mxu0 0.0
        %950 = vmatprep.subr.mxu0 0.0
        %951 = vmatpush1.msra.mxu0 0.0
        %952 = vmatprep.subr.mxu0 0.0
        %953 = vmatpush1.msra.mxu0 0.0
        %954 = vmatprep.subr.mxu0 0.0
        %955 = vmatpush1.msra.mxu0 0.0
        %956 = vmatprep.subr.mxu0 0.0
        %957 = vmatpush1.msra.mxu0 0.0
        %958 = vmatprep.subr.mxu0 0.0
        %959 = vmatpush1.msra.mxu0 0.0
        %960 = vmatprep.subr.mxu0 0.0
        %961 = vmatpush1.msra.mxu0 0.0
        %962 = vmatprep.subr.mxu0 0.0
        %963 = vmatpush1.msra.mxu0 0.0
        %964 = vmatprep.subr.mxu0 0.0
        %965 = vmatpush1.msra.mxu0 0.0
        %966 = vmatprep.subr.mxu0 0.0
        %967 = vmatpush1.msra.mxu0 0.0
        %968 = vmatprep.subr.mxu0 0.0
        %969 = vmatpush1.msra.mxu0 0.0
        %970 = vmatprep.subr.mxu0 0.0
        %971 = vmatpush1.msra.mxu0 0.0
        %972 = vmatprep.subr.mxu0 0.0
        %973 = vmatpush1.msra.mxu0 0.0
        %974 = vmatprep.subr.mxu0 0.0
        %975 = vmatpush1.msra.mxu0 0.0
        %976 = vmatprep.mubr.f32.mxu0 0.0
        %977 = vmatmul.mubr.f32.gmra.mrb[0].mxu0 %v910
        %v978 = vpop.f32.mrb[0].mxu0
        %v979 = vadd.f32 %v907, %v978
        %v980 = vpop.f32.mrb[0].mxu0
        %v981 = vadd.f32 %v907, %v980
        %982 = vdwg.mxu0
        %v983 = vmul.f32 %v493, %v979
        %v984 = vmul.f32 %v494, %v981
        %v987 = vrot.slane %v979, 4
        %v988 = vrot.slane %v981, 4
        %v991 = vmul.f32 %v493, %v987
        %v992 = vmul.f32 %v494, %v988
        %v993 = vmul.f32 %v495, %v979
        %v994 = vmul.f32 %v496, %v981
        %v995 = vmul.f32 %v495, %v987
        %v996 = vmul.f32 %v496, %v988
        %v997 = vlaneseq
        %v998 = vshrl.u32 %v997, 7
        %v999 = vsub.s32 0, %v998
        %v1000 = vrot.slane %v499, %v999
        %v1001 = vlaneseq
        %v1002 = vshrl.u32 %v1001, 7
        %v1003 = vsub.s32 0, %v1002
        %v1004 = vrot.slane %v500, %v1003
        %v1005 = vmul.f32 %v1000, %v983
        %v1006 = vmul.f32 %v1004, %v984
        %v1007 = vadd.f32 %v1005, 0.0
        %v1008 = vadd.f32 %v1006, 0.0
        %v1009 = vlaneseq
        %v1010 = vshrl.u32 %v1009, 7
        %v1011 = vsub.s32 1, %v1010
        %v1012 = vrot.slane %v499, %v1011
        %v1013 = vlaneseq
        %v1014 = vshrl.u32 %v1013, 7
        %v1015 = vsub.s32 1, %v1014
        %v1016 = vrot.slane %v500, %v1015
        %v1017 = vmul.f32 %v1012, %v991
        %v1018 = vmul.f32 %v1016, %v992
        %v1019 = vadd.f32 %v1007, %v1017
        %v1020 = vadd.f32 %v1008, %v1018
        %v1021 = vlaneseq
        %v1022 = vshrl.u32 %v1021, 7
        %v1023 = vsub.s32 6, %v1022
        %v1024 = vrot.slane %v499, %v1023
        %v1025 = vlaneseq
        %v1026 = vshrl.u32 %v1025, 7
        %v1027 = vsub.s32 6, %v1026
        %v1028 = vrot.slane %v500, %v1027
        %v1029 = vmul.f32 %v1024, %v991
        %v1030 = vmul.f32 %v1028, %v992
        %v1033 = vrot.slane %v1029, 4
        %v1034 = vrot.slane %v1030, 4
        %v1037 = vadd.f32 %v1019, %v1033
        %v1038 = vadd.f32 %v1020, %v1034
        %v1039 = vlaneseq
        %v1040 = vshrl.u32 %v1039, 7
        %v1041 = vsub.s32 7, %v1040
        %v1042 = vrot.slane %v499, %v1041
        %v1043 = vlaneseq
        %v1044 = vshrl.u32 %v1043, 7
        %v1045 = vsub.s32 7, %v1044
        %v1046 = vrot.slane %v500, %v1045
        %v1047 = vmul.f32 %v1042, %v983
        %v1048 = vmul.f32 %v1046, %v984
        %v1051 = vrot.slane %v1047, 4
        %v1052 = vrot.slane %v1048, 4
        %v1055 = vadd.f32 %v1037, %v1051
        %v1056 = vadd.f32 %v1038, %v1052
        %v1057 = vlaneseq
        %v1058 = vshrl.u32 %v1057, 7
        %v1059 = vsub.s32 4, %v1058
        %v1060 = vrot.slane %v501, %v1059
        %v1061 = vlaneseq
        %v1062 = vshrl.u32 %v1061, 7
        %v1063 = vsub.s32 4, %v1062
        %v1064 = vrot.slane %v502, %v1063
        %v1065 = vmul.f32 %v1060, %v993
        %v1066 = vmul.f32 %v1064, %v994
        %v1067 = vadd.f32 %v1055, %v1065
        %v1068 = vadd.f32 %v1056, %v1066
        %v1069 = vlaneseq
        %v1070 = vshrl.u32 %v1069, 7
        %v1071 = vsub.s32 5, %v1070
        %v1072 = vrot.slane %v501, %v1071
        %v1073 = vlaneseq
        %v1074 = vshrl.u32 %v1073, 7
        %v1075 = vsub.s32 5, %v1074
        %v1076 = vrot.slane %v502, %v1075
        %v1077 = vmul.f32 %v1072, %v995
        %v1078 = vmul.f32 %v1076, %v996
        %v1079 = vadd.f32 %v1067, %v1077
        %v1080 = vadd.f32 %v1068, %v1078
        %1081 = vst [vmem:[%s478] sm:$0xf] %v1079
        %1082 = vst [vmem:[%s478 + $0x8] sm:$0xf] %v1080
        %v1083 = vlaneseq
        %v1084 = vshrl.u32 %v1083, 7
        %v1085 = vsub.s32 2, %v1084
        %v1086 = vrot.slane %v499, %v1085
        %v1087 = vlaneseq
        %v1088 = vshrl.u32 %v1087, 7
        %v1089 = vsub.s32 2, %v1088
        %v1090 = vrot.slane %v500, %v1089
        %v1091 = vmul.f32 %v1086, %v983
        %v1092 = vmul.f32 %v1090, %v984
        %v1093 = vadd.f32 %v1091, 0.0
        %v1094 = vadd.f32 %v1092, 0.0
        %v1095 = vlaneseq
        %v1096 = vshrl.u32 %v1095, 7
        %v1097 = vsub.s32 3, %v1096
        %v1098 = vrot.slane %v499, %v1097
        %v1099 = vlaneseq
        %v1100 = vshrl.u32 %v1099, 7
        %v1101 = vsub.s32 3, %v1100
        %v1102 = vrot.slane %v500, %v1101
        %v1103 = vmul.f32 %v1098, %v991
        %v1104 = vmul.f32 %v1102, %v992
        %v1105 = vadd.f32 %v1093, %v1103
        %v1106 = vadd.f32 %v1094, %v1104
        %v1107 = vlaneseq
        %v1108 = vshrl.u32 %v1107, 7
        %v1109 = vsub.s32 0, %v1108
        %v1110 = vrot.slane %v501, %v1109
        %v1111 = vlaneseq
        %v1112 = vshrl.u32 %v1111, 7
        %v1113 = vsub.s32 0, %v1112
        %v1114 = vrot.slane %v502, %v1113
        %v1115 = vmul.f32 %v1110, %v991
        %v1116 = vmul.f32 %v1114, %v992
        %v1119 = vrot.slane %v1115, 4
        %v1120 = vrot.slane %v1116, 4
        %v1123 = vadd.f32 %v1105, %v1119
        %v1124 = vadd.f32 %v1106, %v1120
        %v1125 = vlaneseq
        %v1126 = vshrl.u32 %v1125, 7
        %v1127 = vsub.s32 1, %v1126
        %v1128 = vrot.slane %v501, %v1127
        %v1129 = vlaneseq
        %v1130 = vshrl.u32 %v1129, 7
        %v1131 = vsub.s32 1, %v1130
        %v1132 = vrot.slane %v502, %v1131
        %v1133 = vmul.f32 %v1128, %v983
        %v1134 = vmul.f32 %v1132, %v984
        %v1137 = vrot.slane %v1133, 4
        %v1138 = vrot.slane %v1134, 4
        %v1141 = vadd.f32 %v1123, %v1137
        %v1142 = vadd.f32 %v1124, %v1138
        %v1143 = vlaneseq
        %v1144 = vshrl.u32 %v1143, 7
        %v1145 = vsub.s32 6, %v1144
        %v1146 = vrot.slane %v501, %v1145
        %v1147 = vlaneseq
        %v1148 = vshrl.u32 %v1147, 7
        %v1149 = vsub.s32 6, %v1148
        %v1150 = vrot.slane %v502, %v1149
        %v1151 = vmul.f32 %v1146, %v993
        %v1152 = vmul.f32 %v1150, %v994
        %v1153 = vadd.f32 %v1141, %v1151
        %v1154 = vadd.f32 %v1142, %v1152
        %v1155 = vlaneseq
        %v1156 = vshrl.u32 %v1155, 7
        %v1157 = vsub.s32 7, %v1156
        %v1158 = vrot.slane %v501, %v1157
        %v1159 = vlaneseq
        %v1160 = vshrl.u32 %v1159, 7
        %v1161 = vsub.s32 7, %v1160
        %v1162 = vrot.slane %v502, %v1161
        %v1163 = vmul.f32 %v1158, %v995
        %v1164 = vmul.f32 %v1162, %v996
        %v1165 = vadd.f32 %v1153, %v1163
        %v1166 = vadd.f32 %v1154, %v1164
        %v1169 = vrot.slane %v1165, 4
        %v1170 = vrot.slane %v1166, 4
        %1173 = vst [vmem:[%s478] sm:$0xf0] %v1169
        %1174 = vst [vmem:[%s478 + $0x8] sm:$0xf0] %v1170
        %v1175 = vlaneseq
        %v1176 = vshrl.u32 %v1175, 7
        %v1177 = vsub.s32 4, %v1176
        %v1178 = vrot.slane %v499, %v1177
        %v1179 = vlaneseq
        %v1180 = vshrl.u32 %v1179, 7
        %v1181 = vsub.s32 4, %v1180
        %v1182 = vrot.slane %v500, %v1181
        %v1183 = vmul.f32 %v1178, %v983
        %v1184 = vmul.f32 %v1182, %v984
        %v1185 = vadd.f32 %v1183, 0.0
        %v1186 = vadd.f32 %v1184, 0.0
        %v1187 = vlaneseq
        %v1188 = vshrl.u32 %v1187, 7
        %v1189 = vsub.s32 5, %v1188
        %v1190 = vrot.slane %v499, %v1189
        %v1191 = vlaneseq
        %v1192 = vshrl.u32 %v1191, 7
        %v1193 = vsub.s32 5, %v1192
        %v1194 = vrot.slane %v500, %v1193
        %v1195 = vmul.f32 %v1190, %v991
        %v1196 = vmul.f32 %v1194, %v992
        %v1197 = vadd.f32 %v1185, %v1195
        %v1198 = vadd.f32 %v1186, %v1196
        %v1199 = vlaneseq
        %v1200 = vshrl.u32 %v1199, 7
        %v1201 = vsub.s32 2, %v1200
        %v1202 = vrot.slane %v501, %v1201
        %v1203 = vlaneseq
        %v1204 = vshrl.u32 %v1203, 7
        %v1205 = vsub.s32 2, %v1204
        %v1206 = vrot.slane %v502, %v1205
        %v1207 = vmul.f32 %v1202, %v991
        %v1208 = vmul.f32 %v1206, %v992
        %v1211 = vrot.slane %v1207, 4
        %v1212 = vrot.slane %v1208, 4
        %v1215 = vadd.f32 %v1197, %v1211
        %v1216 = vadd.f32 %v1198, %v1212
        %v1217 = vlaneseq
        %v1218 = vshrl.u32 %v1217, 7
        %v1219 = vsub.s32 3, %v1218
        %v1220 = vrot.slane %v501, %v1219
        %v1221 = vlaneseq
        %v1222 = vshrl.u32 %v1221, 7
        %v1223 = vsub.s32 3, %v1222
        %v1224 = vrot.slane %v502, %v1223
        %v1225 = vmul.f32 %v1220, %v983
        %v1226 = vmul.f32 %v1224, %v984
        %v1229 = vrot.slane %v1225, 4
        %v1230 = vrot.slane %v1226, 4
        %v1233 = vadd.f32 %v1215, %v1229
        %v1234 = vadd.f32 %v1216, %v1230
        %v1235 = vlaneseq
        %v1236 = vshrl.u32 %v1235, 7
        %v1237 = vsub.s32 0, %v1236
        %v1238 = vrot.slane %v503, %v1237
        %v1239 = vlaneseq
        %v1240 = vshrl.u32 %v1239, 7
        %v1241 = vsub.s32 0, %v1240
        %v1242 = vrot.slane %v504, %v1241
        %v1243 = vmul.f32 %v1238, %v993
        %v1244 = vmul.f32 %v1242, %v994
        %v1245 = vadd.f32 %v1233, %v1243
        %v1246 = vadd.f32 %v1234, %v1244
        %v1247 = vlaneseq
        %v1248 = vshrl.u32 %v1247, 7
        %v1249 = vsub.s32 1, %v1248
        %v1250 = vrot.slane %v503, %v1249
        %v1251 = vlaneseq
        %v1252 = vshrl.u32 %v1251, 7
        %v1253 = vsub.s32 1, %v1252
        %v1254 = vrot.slane %v504, %v1253
        %v1255 = vmul.f32 %v1250, %v995
        %v1256 = vmul.f32 %v1254, %v996
        %v1257 = vadd.f32 %v1245, %v1255
        %v1258 = vadd.f32 %v1246, %v1256
        %1259 = vst [vmem:[%s478 + $0x10] sm:$0xf] %v1257
        %1260 = vst [vmem:[%s478 + $0x18] sm:$0xf] %v1258
        %s1261 = sand.u32 %s275, 1
        %s1262 = sand.u32 %s275, 1
        %s1263 = smul.addr %s1262, 32
        %s1264 = scalar_lea.vmem [#allocation4], %s1263
        // Predicated region
        $region107: #{transport_term_forward.1} parent=97 // pred_check
          %p1265 = pneg %p285
        $region108: #{transport_term_forward.1} parent=97 // pred_check_branch
          %1267 = sbr.rel (%p1265) target = $region110
        $region109: #{transport_term_forward.1} parent=97 // pred_region
          %s1268 = smul.u32 2, %s25
          %s1269 = smul.addr %s26, 8
          %s1270 = sadd.s32 %s1268, %s1269
          %s1271 = smul.addr %s1270, 8
          %s1272 = scalar_lea.vmem %s10, %s1271
          // Predicated region
          $region111: #{transport_term_forward.1} parent=109 // pred_check
            _
          $region112: #{transport_term_forward.1} parent=109 // pred_check_branch
            %1274 = sbr.rel (0) target = $region114
          $region113: #{transport_term_forward.1} parent=109 // pred_region
            // Predicated region
            $region115: #{transport_term_forward.1} parent=113 // pred_check
              _
            $region116: #{transport_term_forward.1} parent=113 // pred_check_branch
              %1276 = sbr.rel (0) target = $region118
            $region117: #{transport_term_forward.1} parent=113 // pred_region
              loop: start=0, step=1, limit=1
              $region119: #{transport_term_forward.1} parent=117 // loop_pre_header
                _
              $region120: #{transport_term_forward.1} parent=117 // loop_header
                %s1278 = sphi 0, %s1282
                %p1279 = scmp.ge.s32.totalorder %s1278, 1
                %s1283 = sphi %s1264, %s1264
                %s1284 = sphi %s1272, %s1272
              $region121: #{transport_term_forward.1} parent=117 // loop_header_branch
                %1281 = sbr.rel (%p1279) target = $region125
              $region122: #{transport_term_forward.1} parent=117 // loop_body
                %v1285 = vld [vmem:[%s1283] sm:$0xff]
                %1286 = vst [vmem:[%s1284] sm:$0xff] %v1285
                %v1287 = vld [vmem:[%s1283 + $0x8] sm:$0xff]
                %1288 = vst [vmem:[%s1284 + $0x8] sm:$0xff] %v1287
                %v1289 = vld [vmem:[%s1283 + $0x10] sm:$0xff]
                %1290 = vst [vmem:[%s1284 + $0x20] sm:$0xff] %v1289
                %v1291 = vld [vmem:[%s1283 + $0x18] sm:$0xff]
                %1292 = vst [vmem:[%s1284 + $0x28] sm:$0xff] %v1291
              $region123: #{transport_term_forward.1} parent=117 // loop_footer
                %s1282 = sadd.s32 1, %s1278
              $region124: #{transport_term_forward.1} parent=117 // loop_footer_branch
                %1277 = sbr.rel target = $region120
              $region125: #{transport_term_forward.1} parent=117 // loop_exit
                _
            $region118: #{transport_term_forward.1} parent=113 // pred_fallthru
              _
            // Predicated region
            $region126: #{transport_term_forward.1} parent=113 // pred_check
              _
            $region127: #{transport_term_forward.1} parent=113 // pred_check_branch
              %1294 = sbr.rel target = $region129
            $region128: #{transport_term_forward.1} parent=113 // pred_region
              _
            $region129: #{transport_term_forward.1} parent=113 // pred_fallthru
              _
          $region114: #{transport_term_forward.1} parent=109 // pred_fallthru
            _
          %1295 = vnop
        $region110: #{transport_term_forward.1} parent=97 // pred_fallthru
          _
      $region98: #{transport_term_forward.1} parent=5 // pred_fallthru
        _
      %p1296 = scmp.le.s32.totalorder 2, %s16
      // Predicated region
      $region130: #{transport_term_forward.1} parent=5 // pred_check
        %p1297 = pneg %p1296
      $region131: #{transport_term_forward.1} parent=5 // pred_check_branch
        %1299 = sbr.rel (%p1297) target = $region133
      $region132: #{transport_term_forward.1} parent=5 // pred_region
        %s1300 = ssub.s32 %s16, 2
        // Predicated region
        $region134: #{transport_term_forward.1} parent=132 // pred_check
          %p1301 = pneg %p291
        $region135: #{transport_term_forward.1} parent=132 // pred_check_branch
          %1303 = sbr.rel (%p1301) target = $region137
        $region136: #{transport_term_forward.1} parent=132 // pred_region
          %s1304 = sand.u32 %s276, 1
          %s1305 = sand.u32 %s276, 1
          %s1306 = smul.addr %s1305, 32
          %s1307 = scalar_lea.vmem [#allocation4], %s1306
        $region137: #{transport_term_forward.1} parent=132 // pred_fallthru
          _
      $region133: #{transport_term_forward.1} parent=5 // pred_fallthru
        _
    $region6: #{transport_term_forward.1} parent=1 // loop_footer
      %s20 = sadd.s32 1, %s16
    $region7: #{transport_term_forward.1} parent=1 // loop_footer_branch
      %15 = sbr.rel target = $region3
    $region8: #{transport_term_forward.1} parent=1 // loop_exit
      _

</llo_original>
